<compile_context>
chip_gen: v5e
topology: v5e:2x2
jax: 0.10.0
libtpu: 0.0.40
codegen_flags: <defaults>
</compile_context>

<pallas_src>
import functools

import jax
import jax.numpy as jnp
from jax.experimental import pallas as pl
from jax.experimental.pallas import tpu as pltpu


def _round_up(x: int, m: int) -> int:
    return ((x + m - 1) // m) * m


def _biaffine_kernel(emb_a_ref, emb_b_ref, wa_ref, ba_ref, wb_ref, bb_ref,
                     uflat_ref, out_ref, t_ref, b1t_ref,
                     *, output_size: int, hp: int, negative_slope: float,
                     mxu_dtype):
    # emb_a_ref : (1, tm, Dp)   m-tile of the padded sequence (a side)
    # emb_b_ref : (1, tn, Dp)   n-tile of the padded sequence (b side)
    # wa_ref    : (Dp, Hp)      augmented+padded linear_a weight (mxu dtype)
    # ba_ref    : (1, Hp)       augmented+padded linear_a bias, f32 (col H == 1)
    # wb_ref    : (Dp, Hp)
    # bb_ref    : (1, Hp)
    # uflat_ref : (Hp, O*Hp)    u_flat[i, o*Hp + j] = U[i, o, j] (zero padded)
    # out_ref   : (1, O, tm, tn)
    # t_ref     : (tm, O*Hp)        VMEM scratch, valid for current (b, m)
    # b1t_ref   : (n_tiles, Hp, tn) VMEM scratch, valid for current b
    m = pl.program_id(1)
    n = pl.program_id(2)

    # a-side: once per (batch, m-tile).  Fused first stage: ONE lane-dense
    # MXU matmul covers all O relation channels.
    @pl.when(n == 0)
    def _():
        xa = emb_a_ref[0]                                          # (tm, Dp) f32
        xa = jnp.where(xa >= 0, xa, negative_slope * xa)           # LeakyReLU (f32)
        a1 = jnp.dot(xa.astype(mxu_dtype), wa_ref[...],
                     preferred_element_type=jnp.float32) + ba_ref[...]   # (tm, Hp) f32
        t_ref[...] = jnp.dot(a1.astype(mxu_dtype), uflat_ref[...],
                             preferred_element_type=jnp.float32
                             ).astype(t_ref.dtype)                 # (tm, O*Hp)

    # b-side: once per (batch, n-tile), along the m == 0 row; cached in VMEM
    # (pre-transposed) and reused for every m-tile of the same batch.
    @pl.when(m == 0)
    def _():
        xb = emb_b_ref[0]                                          # (tn, Dp) f32
        xb = jnp.where(xb >= 0, xb, negative_slope * xb)
        b1 = jnp.dot(xb.astype(mxu_dtype), wb_ref[...],
                     preferred_element_type=jnp.float32) + bb_ref[...]   # (tn, Hp) f32
        b1t_ref[n] = b1.astype(b1t_ref.dtype).T                    # (Hp, tn)

    b1t = b1t_ref[n]                                               # (Hp, tn)
    for o in range(output_size):                                   # static, small unroll
        t_o = t_ref[:, o * hp:(o + 1) * hp]                        # (tm, Hp), 128-aligned slice
        out_ref[0, o, :, :] = jnp.dot(
            t_o, b1t, preferred_element_type=jnp.float32).astype(out_ref.dtype)


def prepare_biaffine_params(wa, ba, wb, bb, biaffine_u, *,
                            mxu_dtype=jnp.bfloat16):
    """One-time parameter preparation: augment with the 'ones' column, pad to
    lane-aligned shapes, flatten U for the fused first-stage matmul, and cast
    the MXU operands to `mxu_dtype` (bf16 by default; accumulation stays f32)."""
    D, H = wa.shape
    O = biaffine_u.shape[1]
    Dp = _round_up(D, 8)
    Hp = _round_up(H + 1, 128)

    wa_p = jnp.zeros((Dp, Hp), jnp.float32).at[:D, :H].set(wa).astype(mxu_dtype)
    wb_p = jnp.zeros((Dp, Hp), jnp.float32).at[:D, :H].set(wb).astype(mxu_dtype)
    # Biases stay f32 (added after the f32-accumulated matmul); col H carries
    # the exact 1.0 of the augmented "ones" column.
    ba_p = jnp.zeros((1, Hp), jnp.float32).at[0, :H].set(ba).at[0, H].set(1.0)
    bb_p = jnp.zeros((1, Hp), jnp.float32).at[0, :H].set(bb).at[0, H].set(1.0)

    # u_flat[i, o*Hp + j] = biaffine_u[i, o, j]; padded rows/cols are zero.
    u_p = jnp.zeros((Hp, O, Hp), jnp.float32).at[:H + 1, :, :H + 1].set(biaffine_u)
    u_flat = u_p.reshape(Hp, O * Hp).astype(mxu_dtype)

    return dict(wa=wa_p, ba=ba_p, wb=wb_p, bb=bb_p, u_flat=u_flat,
                D=D, H=H, O=O, Dp=Dp, Hp=Hp, mxu_dtype=mxu_dtype)


def _estimate_vmem_bytes(Mp, Dp, Hp, O, tm, tn, mxu_bytes, out_bytes):
    emb = 2 * (tm + tn) * Dp * 4                       # double-buffered input tiles (f32)
    weights = (2 * Dp * Hp * mxu_bytes                 # Wa, Wb (single-buffered)
               + 2 * Hp * 4                            # ba, bb (f32)
               + Hp * O * Hp * mxu_bytes)              # u_flat (single-buffered)
    out = 2 * O * tm * tn * out_bytes                  # double-buffered output block
    t = tm * O * Hp * mxu_bytes                        # T scratch
    b1t = Mp * Hp * mxu_bytes                          # b1^T scratch (all n tiles)
    slack = 2 << 20                                    # semaphores / compiler scratch
    return emb + weights + out + t + b1t + slack


def biaffine_forward(embedding, params, *, negative_slope: float = 0.01,
                     tm: int | None = None, tn: int | None = None,
                     out_dtype=jnp.float32, omajor_output: bool = False,
                     vmem_budget_bytes: int | None = None):
    """embedding: (B, M, D) f32.  Returns (B, M, M, O) in the PyTorch layout,
    or (B, O, M, M) if omajor_output=True (skips the final HBM transpose)."""
    B, M, D = embedding.shape
    assert D == params["D"]
    Dp, Hp, O = params["Dp"], params["Hp"], params["O"]
    mxu_dtype = params["mxu_dtype"]
    mxu_bytes = jnp.dtype(mxu_dtype).itemsize
    out_bytes = jnp.dtype(out_dtype).itemsize

    Mp = _round_up(M, 128)
    emb_p = jnp.zeros((B, Mp, Dp), embedding.dtype).at[:, :M, :D].set(embedding)

    # VMEM budget: ~75% of physical VMEM (64 MiB conservative fallback covers
    # v7x); v5e/v6e (128 MiB) therefore get ~96 MiB when the query succeeds.
    if vmem_budget_bytes is None:
        try:
            vmem_phys = pltpu.get_tpu_info().vmem_capacity_bytes
        except Exception:
            vmem_phys = 64 * 1024 * 1024
        vmem_budget_bytes = int(0.75 * vmem_phys)

    def fits(tm_, tn_):
        return _estimate_vmem_bytes(Mp, Dp, Hp, O, tm_, tn_,
                                    mxu_bytes, out_bytes) <= vmem_budget_bytes

    cands = [d for d in range(Mp, 0, -128) if Mp % d == 0]
    tm_cands = [tm] if tm is not None else cands
    tn_cands = [tn] if tn is not None else cands
    best = None
    for tm_ in tm_cands:
        for tn_ in tn_cands:
            if Mp % tm_ or tm_ % 128 or Mp % tn_ or tn_ % 128:
                continue
            if fits(tm_, tn_) and (best is None or tm_ * tn_ > best[0] * best[1]):
                best = (tm_, tn_)
    assert best is not None, (
        f"no (tm, tn) tiling fits the VMEM budget of {vmem_budget_bytes} bytes "
        f"(Mp={Mp}, Hp={Hp}, O={O})")
    tm, tn = best
    assert fits(tm, tn)
    m_tiles, n_tiles = Mp // tm, Mp // tn

    kernel = functools.partial(_biaffine_kernel, output_size=O, hp=Hp,
                               negative_slope=negative_slope, mxu_dtype=mxu_dtype)

    def _weight_spec(shape):
        # Constant index map (never re-DMA'd); single buffer saves a full copy
        # of each weight in VMEM (u_flat is the big one).
        return pl.BlockSpec(shape, lambda b, m, n: (0, 0),
                            pipeline_mode=pl.Buffered(1))

    out_omajor = pl.pallas_call(
        kernel,
        out_shape=jax.ShapeDtypeStruct((B, O, Mp, Mp), out_dtype),
        grid_spec=pltpu.PrefetchScalarGridSpec(
            num_scalar_prefetch=0,
            grid=(B, m_tiles, n_tiles),
            in_specs=[
                pl.BlockSpec((1, tm, Dp), lambda b, m, n: (b, m, 0)),   # a-side tile
                pl.BlockSpec((1, tn, Dp), lambda b, m, n: (b, n, 0)),   # b-side tile
                _weight_spec((Dp, Hp)),        # Wa
                _weight_spec((1, Hp)),         # ba
                _weight_spec((Dp, Hp)),        # Wb
                _weight_spec((1, Hp)),         # bb
                _weight_spec((Hp, O * Hp)),    # U_flat
            ],
            out_specs=pl.BlockSpec((1, O, tm, tn), lambda b, m, n: (b, 0, m, n)),
            scratch_shapes=[
                pltpu.VMEM((tm, O * Hp), mxu_dtype),        # T  (per (b, m))
                pltpu.VMEM((n_tiles, Hp, tn), mxu_dtype),   # b1^T (per b)
            ],
        ),
        compiler_params=pltpu.CompilerParams(
            # m / n MUST stay "arbitrary": the T / b1^T scratches are computed
            # at n == 0 / m == 0 and reused across later tiles of the same
            # batch element (see scratch-carry contract in the header).
            dimension_semantics=("parallel", "arbitrary", "arbitrary"),
            vmem_limit_bytes=int(vmem_budget_bytes)),
    )(emb_p, emb_p, params["wa"], params["ba"], params["wb"], params["bb"],
      params["u_flat"])

    cropped = out_omajor[:, :, :M, :M]                    # (B, O, M, M)
    if omajor_output:
        return cropped
    return jnp.transpose(cropped, (0, 2, 3, 1))           # (B, M, N, O) PyTorch layout


def biaffine_reference(embedding, wa, ba, wb, bb, biaffine_u,
                       negative_slope: float = 0.01):
    x = jnp.where(embedding >= 0, embedding, negative_slope * embedding)
    a = x @ wa + ba
    b = x @ wb + bb
    ones = jnp.ones(a.shape[:-1] + (1,), a.dtype)
    a1 = jnp.concatenate([a, ones], axis=-1)
    b1 = jnp.concatenate([b, ones], axis=-1)
    return jnp.einsum('bmi,ioj,bnj->bmno', a1, biaffine_u, b1)


if __name__ == "__main__":
    # Small deterministic config: input_size=32, hidden_size=32, output_size=4,
    # bias=True, multi_matrix=1, relation_position=False, dropout=0.0
    B, M, D, H, O = 2, 8, 32, 32, 4

    key = jax.random.PRNGKey(0)
    k_emb, k_wa, k_ba, k_wb, k_bb, k_u = jax.random.split(key, 6)

    embedding = jax.random.normal(k_emb, (B, M, D), dtype=jnp.float32)
    # linear weights stored as (in, out) so the kernel does x @ W + b
    wa = jax.random.normal(k_wa, (D, H), dtype=jnp.float32) * 0.1
    ba = jax.random.normal(k_ba, (H,), dtype=jnp.float32) * 0.1
    wb = jax.random.normal(k_wb, (D, H), dtype=jnp.float32) * 0.1
    bb = jax.random.normal(k_bb, (H,), dtype=jnp.float32) * 0.1
    # biaffine parameter: (hidden+1, output_size, hidden+1)
    biaffine_u = jax.random.normal(k_u, (H + 1, O, H + 1), dtype=jnp.float32) * 0.1

    ref = biaffine_reference(embedding, wa, ba, wb, bb, biaffine_u)

    # 1) exact-semantics check with f32 MXU operands.
    params_f32 = prepare_biaffine_params(wa, ba, wb, bb, biaffine_u,
                                         mxu_dtype=jnp.float32)
    out_f32 = jax.block_until_ready(biaffine_forward(embedding, params_f32))
    assert out_f32.shape == (B, M, M, O), out_f32.shape
    assert jnp.allclose(out_f32, ref, rtol=1e-4, atol=1e-4), \
        float(jnp.max(jnp.abs(out_f32 - ref)))

    # 2) production path: bf16 MXU operands with f32 accumulation.
    params_bf16 = prepare_biaffine_params(wa, ba, wb, bb, biaffine_u)
    out_bf16 = jax.block_until_ready(biaffine_forward(embedding, params_bf16))
    assert out_bf16.shape == (B, M, M, O), out_bf16.shape
    assert jnp.allclose(out_bf16, ref, rtol=5e-2, atol=5e-2), \
        float(jnp.max(jnp.abs(out_bf16 - ref)))

    print("KERNEL_OK")
</pallas_src>

<mosaic_0001>
module attributes {stable_mosaic.version = 11 : i64} {
  func.func @_biaffine_kernel(%arg0: i32, %arg1: i32, %arg2: i32, %arg3: memref<1x128x32xf32, #tpu.memory_space<vmem>>, %arg4: memref<1x128x32xf32, #tpu.memory_space<vmem>>, %arg5: memref<32x128xf32, #tpu.memory_space<vmem>>, %arg6: memref<1x128xf32, #tpu.memory_space<vmem>>, %arg7: memref<32x128xf32, #tpu.memory_space<vmem>>, %arg8: memref<1x128xf32, #tpu.memory_space<vmem>>, %arg9: memref<128x512xf32, #tpu.memory_space<vmem>>, %arg10: memref<1x4x128x128xf32, #tpu.memory_space<vmem>>, %arg11: memref<128x512xf32, #tpu.memory_space<vmem>>, %arg12: memref<1x128x128xf32, #tpu.memory_space<vmem>>) attributes {dimension_semantics = [#tpu.dimension_semantics<parallel>, #tpu.dimension_semantics<arbitrary>, #tpu.dimension_semantics<arbitrary>], iteration_bounds = array<i64: 2, 1, 1>, scalar_prefetch = 0 : i64, scratch_operands = 2 : i64, tpu.core_type = #tpu.core_type<tc>, window_params = [{transform_indices = @transform_0, window_bounds = array<i64: 1, 128, 32>}, {transform_indices = @transform_1, window_bounds = array<i64: 1, 128, 32>}, {pipeline_mode = #tpu.pipeline_mode<synchronous>, transform_indices = @transform_2, window_bounds = array<i64: 32, 128>}, {pipeline_mode = #tpu.pipeline_mode<synchronous>, transform_indices = @transform_3, window_bounds = array<i64: 1, 128>}, {pipeline_mode = #tpu.pipeline_mode<synchronous>, transform_indices = @transform_4, window_bounds = array<i64: 32, 128>}, {pipeline_mode = #tpu.pipeline_mode<synchronous>, transform_indices = @transform_5, window_bounds = array<i64: 1, 128>}, {pipeline_mode = #tpu.pipeline_mode<synchronous>, transform_indices = @transform_6, window_bounds = array<i64: 128, 512>}, {transform_indices = @transform_7, window_bounds = array<i64: 1, 4, 128, 128>}]} {
    %c0_i32 = arith.constant 0 : i32
    %0 = arith.cmpi eq, %arg2, %c0_i32 : i32
    %1 = arith.extui %0 : i1 to i32
    %c0_i32_0 = arith.constant 0 : i32
    %2 = arith.cmpi ne, %1, %c0_i32_0 : i32
    scf.if %2 {
      %c0_25 = arith.constant 0 : index
      %c0_26 = arith.constant 0 : index
      %c0_27 = arith.constant 0 : index
      %29 = vector.load %arg3[%c0_25, %c0_26, %c0_27] : memref<1x128x32xf32, #tpu.memory_space<vmem>>, vector<1x128x32xf32>
      %30 = vector.shape_cast %29 : vector<1x128x32xf32> to vector<128x32xf32>
      %cst_28 = arith.constant 0.000000e+00 : f32
      %31 = vector.broadcast %cst_28 : f32 to vector<128x32xf32>
      %32 = arith.cmpf oge, %30, %31 : vector<128x32xf32>
      %cst_29 = arith.constant 0.00999999977 : f32
      %33 = vector.broadcast %cst_29 : f32 to vector<128x32xf32>
      %34 = arith.mulf %33, %30 : vector<128x32xf32>
      %35 = arith.select %32, %30, %34 : vector<128x32xi1>, vector<128x32xf32>
      %c0_30 = arith.constant 0 : index
      %c0_31 = arith.constant 0 : index
      %36 = vector.load %arg5[%c0_30, %c0_31] : memref<32x128xf32, #tpu.memory_space<vmem>>, vector<32x128xf32>
      %cst_32 = arith.constant dense<0.000000e+00> : vector<128x128xf32>
      %37 = tpu.matmul %35, %36, %cst_32 {dimension_numbers = #tpu.dot_dimension_numbers<[1], [0], [0], [1], [0, 0, 1, 1], [], []>} : vector<128x32xf32>, vector<32x128xf32>, vector<128x128xf32> -> vector<128x128xf32>
      %c0_33 = arith.constant 0 : index
      %c0_34 = arith.constant 0 : index
      %38 = vector.load %arg6[%c0_33, %c0_34] : memref<1x128xf32, #tpu.memory_space<vmem>>, vector<1x128xf32>
      %39 = vector.broadcast %38 : vector<1x128xf32> to vector<128x128xf32>
      %40 = arith.addf %37, %39 : vector<128x128xf32>
      %c0_35 = arith.constant 0 : index
      %c0_36 = arith.constant 0 : index
      %41 = vector.load %arg9[%c0_35, %c0_36] : memref<128x512xf32, #tpu.memory_space<vmem>>, vector<128x512xf32>
      %cst_37 = arith.constant dense<0.000000e+00> : vector<128x512xf32>
      %42 = tpu.matmul %40, %41, %cst_37 {dimension_numbers = #tpu.dot_dimension_numbers<[1], [0], [0], [1], [0, 0, 1, 1], [], []>} : vector<128x128xf32>, vector<128x512xf32>, vector<128x512xf32> -> vector<128x512xf32>
      %c0_38 = arith.constant 0 : index
      %c0_39 = arith.constant 0 : index
      %43 = vector.load %arg11[%c0_38, %c0_39] : memref<128x512xf32, #tpu.memory_space<vmem>>, vector<128x512xf32>
      tpu.vector_store %arg11[%c0_38, %c0_39], %42 {strides = array<i32>} : memref<128x512xf32, #tpu.memory_space<vmem>>, vector<128x512xf32>,
    } else {
    }
    %c0_i32_1 = arith.constant 0 : i32
    %3 = arith.cmpi eq, %arg1, %c0_i32_1 : i32
    %4 = arith.extui %3 : i1 to i32
    %c0_i32_2 = arith.constant 0 : i32
    %5 = arith.cmpi ne, %4, %c0_i32_2 : i32
    scf.if %5 {
      %c0_25 = arith.constant 0 : index
      %c0_26 = arith.constant 0 : index
      %c0_27 = arith.constant 0 : index
      %29 = vector.load %arg4[%c0_25, %c0_26, %c0_27] : memref<1x128x32xf32, #tpu.memory_space<vmem>>, vector<1x128x32xf32>
      %30 = vector.shape_cast %29 : vector<1x128x32xf32> to vector<128x32xf32>
      %cst_28 = arith.constant 0.000000e+00 : f32
      %31 = vector.broadcast %cst_28 : f32 to vector<128x32xf32>
      %32 = arith.cmpf oge, %30, %31 : vector<128x32xf32>
      %cst_29 = arith.constant 0.00999999977 : f32
      %33 = vector.broadcast %cst_29 : f32 to vector<128x32xf32>
      %34 = arith.mulf %33, %30 : vector<128x32xf32>
      %35 = arith.select %32, %30, %34 : vector<128x32xi1>, vector<128x32xf32>
      %c0_30 = arith.constant 0 : index
      %c0_31 = arith.constant 0 : index
      %36 = vector.load %arg7[%c0_30, %c0_31] : memref<32x128xf32, #tpu.memory_space<vmem>>, vector<32x128xf32>
      %cst_32 = arith.constant dense<0.000000e+00> : vector<128x128xf32>
      %37 = tpu.matmul %35, %36, %cst_32 {dimension_numbers = #tpu.dot_dimension_numbers<[1], [0], [0], [1], [0, 0, 1, 1], [], []>} : vector<128x32xf32>, vector<32x128xf32>, vector<128x128xf32> -> vector<128x128xf32>
      %c0_33 = arith.constant 0 : index
      %c0_34 = arith.constant 0 : index
      %38 = vector.load %arg8[%c0_33, %c0_34] : memref<1x128xf32, #tpu.memory_space<vmem>>, vector<1x128xf32>
      %39 = vector.broadcast %38 : vector<1x128xf32> to vector<128x128xf32>
      %40 = arith.addf %37, %39 : vector<128x128xf32>
      %41 = tpu.transpose %40, [1, 0] : vector<128x128xf32> -> vector<128x128xf32>
      %42 = arith.index_cast %arg2 : i32 to index
      %c0_35 = arith.constant 0 : index
      %c0_36 = arith.constant 0 : index
      %43 = vector.load %arg12[%42, %c0_35, %c0_36] : memref<1x128x128xf32, #tpu.memory_space<vmem>>, vector<1x128x128xf32>
      %44 = vector.shape_cast %43 : vector<1x128x128xf32> to vector<128x128xf32>
      %45 = vector.shape_cast %41 : vector<128x128xf32> to vector<1x128x128xf32>
      tpu.vector_store %arg12[%42, %c0_35, %c0_36], %45 {strides = array<i32>} : memref<1x128x128xf32, #tpu.memory_space<vmem>>, vector<1x128x128xf32>,
    } else {
    }
    %6 = arith.index_cast %arg2 : i32 to index
    %c0 = arith.constant 0 : index
    %c0_3 = arith.constant 0 : index
    %7 = vector.load %arg12[%6, %c0, %c0_3] : memref<1x128x128xf32, #tpu.memory_space<vmem>>, vector<1x128x128xf32>
    %8 = vector.shape_cast %7 : vector<1x128x128xf32> to vector<128x128xf32>
    %c0_4 = arith.constant 0 : index
    %c0_5 = arith.constant 0 : index
    %9 = vector.load %arg11[%c0_4, %c0_5] : memref<128x512xf32, #tpu.memory_space<vmem>>, vector<128x128xf32>
    %cst = arith.constant dense<0.000000e+00> : vector<128x128xf32>
    %10 = tpu.matmul %9, %8, %cst {dimension_numbers = #tpu.dot_dimension_numbers<[1], [0], [0], [1], [0, 0, 1, 1], [], []>} : vector<128x128xf32>, vector<128x128xf32>, vector<128x128xf32> -> vector<128x128xf32>
    %c0_6 = arith.constant 0 : index
    %c0_7 = arith.constant 0 : index
    %c0_8 = arith.constant 0 : index
    %c0_9 = arith.constant 0 : index
    %11 = vector.load %arg10[%c0_6, %c0_7, %c0_8, %c0_9] : memref<1x4x128x128xf32, #tpu.memory_space<vmem>>, vector<1x1x128x128xf32>
    %12 = vector.shape_cast %11 : vector<1x1x128x128xf32> to vector<128x128xf32>
    %13 = vector.shape_cast %10 : vector<128x128xf32> to vector<1x1x128x128xf32>
    tpu.vector_store %arg10[%c0_6, %c0_7, %c0_8, %c0_9], %13 {strides = array<i32>} : memref<1x4x128x128xf32, #tpu.memory_space<vmem>>, vector<1x1x128x128xf32>,
    %c0_10 = arith.constant 0 : index
    %c128 = arith.constant 128 : index
    %14 = vector.load %arg11[%c0_10, %c128] : memref<128x512xf32, #tpu.memory_space<vmem>>, vector<128x128xf32>
    %cst_11 = arith.constant dense<0.000000e+00> : vector<128x128xf32>
    %15 = tpu.matmul %14, %8, %cst_11 {dimension_numbers = #tpu.dot_dimension_numbers<[1], [0], [0], [1], [0, 0, 1, 1], [], []>} : vector<128x128xf32>, vector<128x128xf32>, vector<128x128xf32> -> vector<128x128xf32>
    %c0_12 = arith.constant 0 : index
    %c1 = arith.constant 1 : index
    %c0_13 = arith.constant 0 : index
    %c0_14 = arith.constant 0 : index
    %16 = vector.load %arg10[%c0_12, %c1, %c0_13, %c0_14] : memref<1x4x128x128xf32, #tpu.memory_space<vmem>>, vector<1x1x128x128xf32>
    %17 = vector.shape_cast %16 : vector<1x1x128x128xf32> to vector<128x128xf32>
    %18 = vector.shape_cast %15 : vector<128x128xf32> to vector<1x1x128x128xf32>
    tpu.vector_store %arg10[%c0_12, %c1, %c0_13, %c0_14], %18 {strides = array<i32>} : memref<1x4x128x128xf32, #tpu.memory_space<vmem>>, vector<1x1x128x128xf32>,
    %c0_15 = arith.constant 0 : index
    %c256 = arith.constant 256 : index
    %19 = vector.load %arg11[%c0_15, %c256] : memref<128x512xf32, #tpu.memory_space<vmem>>, vector<128x128xf32>
    %cst_16 = arith.constant dense<0.000000e+00> : vector<128x128xf32>
    %20 = tpu.matmul %19, %8, %cst_16 {dimension_numbers = #tpu.dot_dimension_numbers<[1], [0], [0], [1], [0, 0, 1, 1], [], []>} : vector<128x128xf32>, vector<128x128xf32>, vector<128x128xf32> -> vector<128x128xf32>
    %c0_17 = arith.constant 0 : index
    %c2 = arith.constant 2 : index
    %c0_18 = arith.constant 0 : index
    %c0_19 = arith.constant 0 : index
    %21 = vector.load %arg10[%c0_17, %c2, %c0_18, %c0_19] : memref<1x4x128x128xf32, #tpu.memory_space<vmem>>, vector<1x1x128x128xf32>
    %22 = vector.shape_cast %21 : vector<1x1x128x128xf32> to vector<128x128xf32>
    %23 = vector.shape_cast %20 : vector<128x128xf32> to vector<1x1x128x128xf32>
    tpu.vector_store %arg10[%c0_17, %c2, %c0_18, %c0_19], %23 {strides = array<i32>} : memref<1x4x128x128xf32, #tpu.memory_space<vmem>>, vector<1x1x128x128xf32>,
    %c0_20 = arith.constant 0 : index
    %c384 = arith.constant 384 : index
    %24 = vector.load %arg11[%c0_20, %c384] : memref<128x512xf32, #tpu.memory_space<vmem>>, vector<128x128xf32>
    %cst_21 = arith.constant dense<0.000000e+00> : vector<128x128xf32>
    %25 = tpu.matmul %24, %8, %cst_21 {dimension_numbers = #tpu.dot_dimension_numbers<[1], [0], [0], [1], [0, 0, 1, 1], [], []>} : vector<128x128xf32>, vector<128x128xf32>, vector<128x128xf32> -> vector<128x128xf32>
    %c0_22 = arith.constant 0 : index
    %c3 = arith.constant 3 : index
    %c0_23 = arith.constant 0 : index
    %c0_24 = arith.constant 0 : index
    %26 = vector.load %arg10[%c0_22, %c3, %c0_23, %c0_24] : memref<1x4x128x128xf32, #tpu.memory_space<vmem>>, vector<1x1x128x128xf32>
    %27 = vector.shape_cast %26 : vector<1x1x128x128xf32> to vector<128x128xf32>
    %28 = vector.shape_cast %25 : vector<128x128xf32> to vector<1x1x128x128xf32>
    tpu.vector_store %arg10[%c0_22, %c3, %c0_23, %c0_24], %28 {strides = array<i32>} : memref<1x4x128x128xf32, #tpu.memory_space<vmem>>, vector<1x1x128x128xf32>,
    return
  }
  func.func @transform_0(%arg0: i32, %arg1: i32, %arg2: i32) -> (i32, i32, i32) {
    %c0_i32 = arith.constant 0 : i32
    %c0_i32_0 = arith.constant 0 : i32
    return %arg0, %arg1, %c0_i32 : i32, i32, i32
  }
  func.func @transform_1(%arg0: i32, %arg1: i32, %arg2: i32) -> (i32, i32, i32) {
    %c0_i32 = arith.constant 0 : i32
    %c0_i32_0 = arith.constant 0 : i32
    return %arg0, %arg2, %c0_i32 : i32, i32, i32
  }
  func.func @transform_2(%arg0: i32, %arg1: i32, %arg2: i32) -> (i32, i32) {
    %c0_i32 = arith.constant 0 : i32
    %c0_i32_0 = arith.constant 0 : i32
    %c0_i32_1 = arith.constant 0 : i32
    return %c0_i32, %c0_i32_0 : i32, i32
  }
  func.func @transform_3(%arg0: i32, %arg1: i32, %arg2: i32) -> (i32, i32) {
    %c0_i32 = arith.constant 0 : i32
    %c0_i32_0 = arith.constant 0 : i32
    %c0_i32_1 = arith.constant 0 : i32
    return %c0_i32, %c0_i32_0 : i32, i32
  }
  func.func @transform_4(%arg0: i32, %arg1: i32, %arg2: i32) -> (i32, i32) {
    %c0_i32 = arith.constant 0 : i32
    %c0_i32_0 = arith.constant 0 : i32
    %c0_i32_1 = arith.constant 0 : i32
    return %c0_i32, %c0_i32_0 : i32, i32
  }
  func.func @transform_5(%arg0: i32, %arg1: i32, %arg2: i32) -> (i32, i32) {
    %c0_i32 = arith.constant 0 : i32
    %c0_i32_0 = arith.constant 0 : i32
    %c0_i32_1 = arith.constant 0 : i32
    return %c0_i32, %c0_i32_0 : i32, i32
  }
  func.func @transform_6(%arg0: i32, %arg1: i32, %arg2: i32) -> (i32, i32) {
    %c0_i32 = arith.constant 0 : i32
    %c0_i32_0 = arith.constant 0 : i32
    %c0_i32_1 = arith.constant 0 : i32
    return %c0_i32, %c0_i32_0 : i32, i32
  }
  func.func @transform_7(%arg0: i32, %arg1: i32, %arg2: i32) -> (i32, i32, i32, i32) {
    %c0_i32 = arith.constant 0 : i32
    %c0_i32_0 = arith.constant 0 : i32
    return %arg0, %c0_i32, %arg1, %arg2 : i32, i32, i32, i32
  }
}

</mosaic_0001>

<llo_original>
// kernel: tpu_custom_call.1
$region0: #{tpu_custom_call.1}
  #allocation0 [shape = 'u32[]', space=smem, size = 0x4, offset = 0x4, fixed_abs, tag = 'smem constant byte address 0x4 - core index']
  #allocation1 [shape = 'u32[72,128]{1,0:T(1,128)}', space=vmem, size = 0x9000, scoped, tag = 'internal scratch']
  #allocation2 [shape = 'f32[128,512]{1,0:T(8,128)}', space=vmem, size = 0x40000, scoped, tag = 'scratch operand']
  #allocation3 [shape = 'f32[1,128,128]{2,1,0:T(8,128)}', space=vmem, size = 0x10000, scoped, tag = 'scratch operand']
  %s0 = inlined_call_operand.vmem [shape: f32[2,128,32], index: 0, kind: input, shape index: {}]
  %s1 = inlined_call_operand.vmem [shape: f32[2,128,32], index: 1, kind: input, shape index: {}]
  %s2 = inlined_call_operand.vmem [shape: f32[32,128], index: 2, kind: input, shape index: {}]
  %s3 = inlined_call_operand.hbm [shape: f32[1,128], index: 3, kind: input, shape index: {}]
  %s4 = inlined_call_operand.vmem [shape: f32[32,128], index: 4, kind: input, shape index: {}]
  %s5 = inlined_call_operand.hbm [shape: f32[1,128], index: 5, kind: input, shape index: {}]
  %s6 = inlined_call_operand.vmem [shape: f32[128,512], index: 6, kind: input, shape index: {}]
  %s7 = inlined_call_operand.hbm [shape: f32[2,4,128,128], index: 7, kind: output, shape index: {}]
  %s8 = sld [smem:[#allocation0]]
  $region77: #{tpu_custom_call.1} parent=0
    _
  %s10 = ssub.s32 1, %s8
  %s11 = scalar_select 0, %s10, %s8
  $region1: #{tpu_custom_call.1} parent=0
    #allocation4 [shape = 'u8[512]{0}', space=vmem, size = 0x400, scoped, tag = 'input window, operand 3, single buffered']
    #allocation5 [shape = 's32[2]{0}', space=sflag, size = 0x8, scoped, tag = 'scoped memory for tpu_custom_call.1']
    #allocation6 [shape = 's32[2]{0}', space=sflag, size = 0x8, scoped, tag = 'scoped memory for tpu_custom_call.1']
    #allocation7 [shape = 'u8[512]{0}', space=vmem, size = 0x400, scoped, tag = 'input window, operand 5, single buffered']
    #allocation8 [shape = 's32[1]{0}', space=sflag, size = 0x4, scoped, tag = 'scoped memory for tpu_custom_call.1']
    #allocation9 [shape = 'u8[524288]{0}', space=vmem, size = 0x80000, scoped, tag = 'output window, operand 0']
    %12 = vsyncpa [#allocation5], 0
    %13 = vsyncpa [#allocation8], 0
    %14 = vsyncpa [#allocation6], 0
    %s15 = scalar_lea.sflag [#allocation6], 1
    %16 = vsyncpa %s15, 0
    loop: start=0, step=1, limit=4
    $region2: #{tpu_custom_call.1} parent=1 // loop_pre_header
      _
    $region3: #{tpu_custom_call.1} parent=1 // loop_header
      %s18 = sphi 0, %s22
      %p19 = scmp.ge.s32.totalorder %s18, 4
      %s25 = sphi 0, %s44
      %s26 = sphi 0, %s40
      %s27 = sphi 0, %s36
      %s28 = sphi 0, %s25
      %s29 = sphi 0, %s26
      %s30 = sphi 0, %s27
      %s31 = sphi 0, %s28
      %s32 = sphi 0, %s29
      %s33 = sphi 0, %s30
      %s49 = sphi 0, %s51
      %s52 = sphi 0, %s49
      %s53 = sphi 0, %s52
      %s69 = sphi 0, %s53
      %s77 = sphi 0, %s79
      %s80 = sphi 0, %s77
      %s81 = sphi 0, %s80
      %s97 = sphi 0, %s81
      %s101 = sphi 0, %s101
      %s103 = sphi 0, %s101
      %s104 = sphi 0, %s103
      %s118 = sphi 0, %s104
      %s122 = sphi 0, %s122
      %s124 = sphi 0, %s122
      %s125 = sphi 0, %s124
      %s139 = sphi 0, %s125
      %s143 = sphi 0, %s143
      %s145 = sphi 0, %s143
      %s146 = sphi 0, %s145
      %s160 = sphi 0, %s146
      %s164 = sphi 0, %s164
      %s166 = sphi 0, %s164
      %s167 = sphi 0, %s166
      %s181 = sphi 0, %s167
      %s185 = sphi 0, %s185
      %s187 = sphi 0, %s185
      %s188 = sphi 0, %s187
      %s202 = sphi 0, %s188
      %s212 = sphi 0, %s214
      %s215 = sphi 0, %s212
      %s216 = sphi 0, %s215
      %s232 = sphi 0, %s216
    $region4: #{tpu_custom_call.1} parent=1 // loop_header_branch
      %21 = sbr.rel (%p19) target = $region8
    $region5: #{tpu_custom_call.1} parent=1 // loop_body
      %s23 = ssub.s32 %s18, 1
      %s24 = ssub.s32 %s18, 2
      %s34 = sadd.s32 1, %s27
      %p35 = scmp.ge.s32.totalorder %s34, 1
      %s36 = scalar_select %p35, 0, %s34
      %s37 = sadd.s32 1, %s26
      %s38 = scalar_select %p35, %s37, %s26
      %p39 = scmp.ge.s32.totalorder %s38, 1
      %s40 = scalar_select %p39, 0, %s38
      %s41 = sadd.s32 1, %s25
      %s42 = scalar_select %p39, %s41, %s25
      %p43 = scmp.ge.s32.totalorder %s42, 2
      %s44 = scalar_select %p43, 0, %s42
      %s45 = ssub.s32 %s25, %s44
      %s46 = ssub.s32 %s26, %s40
      %s47 = sor.u32 %s45, %s46
      %p48 = scmp.eq.s32.totalorder %s47, 0
      %s50 = sadd.s32 %s49, 1
      %s51 = scalar_select %p48, %s49, %s50
      %p54 = pneg %p48
      %p55 = scmp.eq.s32.totalorder %s18, 1
      %p56 = por %p54, %p55
      %p57 = scmp.ne.s32.totalorder %s49, %s52
      %p58 = scmp.eq.s32.totalorder %s18, 0
      %p59 = por %p57, %p58
      %p60 = scmp.ne.s32.totalorder %s49, %s52
      %p61 = scmp.eq.s32.totalorder %s23, 1
      %p62 = por %p60, %p61
      %p63 = scmp.ne.s32.totalorder %s52, %s53
      %p64 = scmp.eq.s32.totalorder %s23, 0
      %p65 = por %p63, %p64
      %p66 = scmp.ne.s32.totalorder %s52, %s53
      %p67 = scmp.eq.s32.totalorder %s24, 1
      %p68 = por %p66, %p67
      %p70 = scmp.ne.s32.totalorder %s53, %s69
      %p71 = scmp.eq.s32.totalorder %s24, 0
      %p72 = por %p70, %p71
      %s73 = ssub.s32 %s25, %s44
      %s74 = ssub.s32 %s27, %s36
      %s75 = sor.u32 %s73, %s74
      %p76 = scmp.eq.s32.totalorder %s75, 0
      %s78 = sadd.s32 %s77, 1
      %s79 = scalar_select %p76, %s77, %s78
      %p82 = pneg %p76
      %p83 = scmp.eq.s32.totalorder %s18, 1
      %p84 = por %p82, %p83
      %p85 = scmp.ne.s32.totalorder %s77, %s80
      %p86 = scmp.eq.s32.totalorder %s18, 0
      %p87 = por %p85, %p86
      %p88 = scmp.ne.s32.totalorder %s77, %s80
      %p89 = scmp.eq.s32.totalorder %s23, 1
      %p90 = por %p88, %p89
      %p91 = scmp.ne.s32.totalorder %s80, %s81
      %p92 = scmp.eq.s32.totalorder %s23, 0
      %p93 = por %p91, %p92
      %p94 = scmp.ne.s32.totalorder %s80, %s81
      %p95 = scmp.eq.s32.totalorder %s24, 1
      %p96 = por %p94, %p95
      %p98 = scmp.ne.s32.totalorder %s81, %s97
      %p99 = scmp.eq.s32.totalorder %s24, 0
      %p100 = por %p98, %p99
      %s102 = sadd.s32 %s101, 1
      %p105 = scmp.eq.s32.totalorder %s18, 1
      %p106 = scmp.ne.s32.totalorder %s101, %s103
      %p107 = scmp.eq.s32.totalorder %s18, 0
      %p108 = por %p106, %p107
      %p109 = scmp.ne.s32.totalorder %s101, %s103
      %p110 = scmp.eq.s32.totalorder %s23, 1
      %p111 = por %p109, %p110
      %p112 = scmp.ne.s32.totalorder %s103, %s104
      %p113 = scmp.eq.s32.totalorder %s23, 0
      %p114 = por %p112, %p113
      %p115 = scmp.ne.s32.totalorder %s103, %s104
      %p116 = scmp.eq.s32.totalorder %s24, 1
      %p117 = por %p115, %p116
      %p119 = scmp.ne.s32.totalorder %s104, %s118
      %p120 = scmp.eq.s32.totalorder %s24, 0
      %p121 = por %p119, %p120
      %s123 = sadd.s32 %s122, 1
      %p126 = scmp.eq.s32.totalorder %s18, 1
      %p127 = scmp.ne.s32.totalorder %s122, %s124
      %p128 = scmp.eq.s32.totalorder %s18, 0
      %p129 = por %p127, %p128
      %p130 = scmp.ne.s32.totalorder %s122, %s124
      %p131 = scmp.eq.s32.totalorder %s23, 1
      %p132 = por %p130, %p131
      %p133 = scmp.ne.s32.totalorder %s124, %s125
      %p134 = scmp.eq.s32.totalorder %s23, 0
      %p135 = por %p133, %p134
      %p136 = scmp.ne.s32.totalorder %s124, %s125
      %p137 = scmp.eq.s32.totalorder %s24, 1
      %p138 = por %p136, %p137
      %p140 = scmp.ne.s32.totalorder %s125, %s139
      %p141 = scmp.eq.s32.totalorder %s24, 0
      %p142 = por %p140, %p141
      %s144 = sadd.s32 %s143, 1
      %p147 = scmp.eq.s32.totalorder %s18, 1
      %p148 = scmp.ne.s32.totalorder %s143, %s145
      %p149 = scmp.eq.s32.totalorder %s18, 0
      %p150 = por %p148, %p149
      %p151 = scmp.ne.s32.totalorder %s143, %s145
      %p152 = scmp.eq.s32.totalorder %s23, 1
      %p153 = por %p151, %p152
      %p154 = scmp.ne.s32.totalorder %s145, %s146
      %p155 = scmp.eq.s32.totalorder %s23, 0
      %p156 = por %p154, %p155
      %p157 = scmp.ne.s32.totalorder %s145, %s146
      %p158 = scmp.eq.s32.totalorder %s24, 1
      %p159 = por %p157, %p158
      %p161 = scmp.ne.s32.totalorder %s146, %s160
      %p162 = scmp.eq.s32.totalorder %s24, 0
      %p163 = por %p161, %p162
      %s165 = sadd.s32 %s164, 1
      %p168 = scmp.eq.s32.totalorder %s18, 1
      %p169 = scmp.ne.s32.totalorder %s164, %s166
      %p170 = scmp.eq.s32.totalorder %s18, 0
      %p171 = por %p169, %p170
      %p172 = scmp.ne.s32.totalorder %s164, %s166
      %p173 = scmp.eq.s32.totalorder %s23, 1
      %p174 = por %p172, %p173
      %p175 = scmp.ne.s32.totalorder %s166, %s167
      %p176 = scmp.eq.s32.totalorder %s23, 0
      %p177 = por %p175, %p176
      %p178 = scmp.ne.s32.totalorder %s166, %s167
      %p179 = scmp.eq.s32.totalorder %s24, 1
      %p180 = por %p178, %p179
      %p182 = scmp.ne.s32.totalorder %s167, %s181
      %p183 = scmp.eq.s32.totalorder %s24, 0
      %p184 = por %p182, %p183
      %s186 = sadd.s32 %s185, 1
      %p189 = scmp.eq.s32.totalorder %s18, 1
      %p190 = scmp.ne.s32.totalorder %s185, %s187
      %p191 = scmp.eq.s32.totalorder %s18, 0
      %p192 = por %p190, %p191
      %p193 = scmp.ne.s32.totalorder %s185, %s187
      %p194 = scmp.eq.s32.totalorder %s23, 1
      %p195 = por %p193, %p194
      %p196 = scmp.ne.s32.totalorder %s187, %s188
      %p197 = scmp.eq.s32.totalorder %s23, 0
      %p198 = por %p196, %p197
      %p199 = scmp.ne.s32.totalorder %s187, %s188
      %p200 = scmp.eq.s32.totalorder %s24, 1
      %p201 = por %p199, %p200
      %p203 = scmp.ne.s32.totalorder %s188, %s202
      %p204 = scmp.eq.s32.totalorder %s24, 0
      %p205 = por %p203, %p204
      %s206 = ssub.s32 %s25, %s44
      %s207 = ssub.s32 %s26, %s40
      %s208 = sor.u32 %s206, %s207
      %s209 = ssub.s32 %s27, %s36
      %s210 = sor.u32 %s208, %s209
      %p211 = scmp.eq.s32.totalorder %s210, 0
      %s213 = sadd.s32 %s212, 1
      %s214 = scalar_select %p211, %s212, %s213
      %p217 = pneg %p211
      %p218 = scmp.eq.s32.totalorder %s18, 1
      %p219 = por %p217, %p218
      %p220 = scmp.ne.s32.totalorder %s212, %s215
      %p221 = scmp.eq.s32.totalorder %s18, 0
      %p222 = por %p220, %p221
      %p223 = scmp.ne.s32.totalorder %s212, %s215
      %p224 = scmp.eq.s32.totalorder %s23, 1
      %p225 = por %p223, %p224
      %p226 = scmp.ne.s32.totalorder %s215, %s216
      %p227 = scmp.eq.s32.totalorder %s23, 0
      %p228 = por %p226, %p227
      %p229 = scmp.ne.s32.totalorder %s215, %s216
      %p230 = scmp.eq.s32.totalorder %s24, 1
      %p231 = por %p229, %p230
      %p233 = scmp.ne.s32.totalorder %s216, %s232
      %p234 = scmp.eq.s32.totalorder %s24, 0
      %p235 = por %p233, %p234
      %p236 = scmp.le.s32.totalorder 1, %s18
      %p237 = scmp.lt.s32.totalorder %s18, 3
      %p238 = pnand %p236, %p237
      %p239 = pneg %p238
      // Predicated region
      $region9: #{tpu_custom_call.1} parent=5 // pred_check
        _
      $region10: #{tpu_custom_call.1} parent=5 // pred_check_branch
        %241 = sbr.rel (%p238) target = $region12
      $region11: #{tpu_custom_call.1} parent=5 // pred_region
        %s242 = ssub.s32 %s18, 1
        // Predicated region
        $region13: #{tpu_custom_call.1} parent=11 // pred_check
          %p243 = pneg %p114
        $region14: #{tpu_custom_call.1} parent=11 // pred_check_branch
          %245 = sbr.rel (%p243) target = $region16
        $region15: #{tpu_custom_call.1} parent=11 // pred_region
          _
        $region16: #{tpu_custom_call.1} parent=11 // pred_fallthru
          _
        // Predicated region
        $region17: #{tpu_custom_call.1} parent=11 // pred_check
          %p246 = pneg %p135
        $region18: #{tpu_custom_call.1} parent=11 // pred_check_branch
          %248 = sbr.rel (%p246) target = $region20
        $region19: #{tpu_custom_call.1} parent=11 // pred_region
          %250 = vsyncadd [#allocation5], 0
          %s252 = sshll.u32 %s3, 4
          %s253 = int_to_ptr.hbm [resolvable:$true] %s252
          %s254 = sshll.u32 [#allocation4], 4
          %s255 = int_to_ptr.vmem [resolvable:$true] %s254
          %257 = dma.hbm_to_vmem [thread:$0]  %s253, 16, %s255, [#allocation5]
        $region20: #{tpu_custom_call.1} parent=11 // pred_fallthru
          _
        // Predicated region
        $region21: #{tpu_custom_call.1} parent=11 // pred_check
          %p258 = pneg %p156
        $region22: #{tpu_custom_call.1} parent=11 // pred_check_branch
          %260 = sbr.rel (%p258) target = $region24
        $region23: #{tpu_custom_call.1} parent=11 // pred_region
          _
        $region24: #{tpu_custom_call.1} parent=11 // pred_fallthru
          _
        // Predicated region
        $region25: #{tpu_custom_call.1} parent=11 // pred_check
          %p261 = pneg %p177
        $region26: #{tpu_custom_call.1} parent=11 // pred_check_branch
          %263 = sbr.rel (%p261) target = $region28
        $region27: #{tpu_custom_call.1} parent=11 // pred_region
          %265 = vsyncadd [#allocation8], 0
          %s267 = sshll.u32 %s5, 4
          %s268 = int_to_ptr.hbm [resolvable:$true] %s267
          %s269 = sshll.u32 [#allocation7], 4
          %s270 = int_to_ptr.vmem [resolvable:$true] %s269
          %272 = dma.hbm_to_vmem [thread:$0]  %s268, 16, %s270, [#allocation8]
        $region28: #{tpu_custom_call.1} parent=11 // pred_fallthru
          _
        // Predicated region
        $region29: #{tpu_custom_call.1} parent=11 // pred_check
          %p273 = pneg %p198
        $region30: #{tpu_custom_call.1} parent=11 // pred_check_branch
          %275 = sbr.rel (%p273) target = $region32
        $region31: #{tpu_custom_call.1} parent=11 // pred_region
          _
        $region32: #{tpu_custom_call.1} parent=11 // pred_fallthru
          _
      $region12: #{tpu_custom_call.1} parent=5 // pred_fallthru
        _
      %p276 = scmp.lt.s32.totalorder %s18, 2
      // Predicated region
      $region33: #{tpu_custom_call.1} parent=5 // pred_check
        %p277 = pneg %p276
      $region34: #{tpu_custom_call.1} parent=5 // pred_check_branch
        %279 = sbr.rel (%p277) target = $region36
      $region35: #{tpu_custom_call.1} parent=5 // pred_region
        // Predicated region
        $region37: #{tpu_custom_call.1} parent=35 // pred_check
          %p280 = pneg %p59
        $region38: #{tpu_custom_call.1} parent=35 // pred_check_branch
          %282 = sbr.rel (%p280) target = $region40
        $region39: #{tpu_custom_call.1} parent=35 // pred_region
          %s283 = smul.u32 16, %s26
          %p284 = scmp.lt.s32.totalorder %s25, 1
          %s285 = scalar_select %p284, %s25, 1
          %p286 = scmp.lt.s32.totalorder %s283, 15
          %s287 = scalar_select %p286, %s283, 15
          %s288 = smul.addr %s285, 16
          %s289 = sadd.s32 %s287, %s288
          %s290 = smul.addr %s289, 8
          %s291 = scalar_lea.vmem %s0, %s290
          %s292 = smul.u32 16, %s26
        $region40: #{tpu_custom_call.1} parent=35 // pred_fallthru
          _
        // Predicated region
        $region41: #{tpu_custom_call.1} parent=35 // pred_check
          %p293 = pneg %p87
        $region42: #{tpu_custom_call.1} parent=35 // pred_check_branch
          %295 = sbr.rel (%p293) target = $region44
        $region43: #{tpu_custom_call.1} parent=35 // pred_region
          %s296 = smul.u32 16, %s27
          %p297 = scmp.lt.s32.totalorder %s25, 1
          %s298 = scalar_select %p297, %s25, 1
          %p299 = scmp.lt.s32.totalorder %s296, 15
          %s300 = scalar_select %p299, %s296, 15
          %s301 = smul.addr %s298, 16
          %s302 = sadd.s32 %s300, %s301
          %s303 = smul.addr %s302, 8
          %s304 = scalar_lea.vmem %s1, %s303
          %s305 = smul.u32 16, %s27
        $region44: #{tpu_custom_call.1} parent=35 // pred_fallthru
          _
      $region36: #{tpu_custom_call.1} parent=5 // pred_fallthru
        _
      %p306 = scmp.le.s32.totalorder 1, %s18
      %p307 = scmp.lt.s32.totalorder %s18, 3
      %p308 = pnand %p306, %p307
      %p309 = pneg %p308
      // Predicated region
      $region45: #{tpu_custom_call.1} parent=5 // pred_check
        _
      $region46: #{tpu_custom_call.1} parent=5 // pred_check_branch
        %311 = sbr.rel (%p308) target = $region48
      $region47: #{tpu_custom_call.1} parent=5 // pred_region
        %s312 = ssub.s32 %s18, 1
        // Predicated region
        $region49: #{tpu_custom_call.1} parent=47 // pred_check
          %p313 = pneg %p135
        $region50: #{tpu_custom_call.1} parent=47 // pred_check_branch
          %315 = sbr.rel (%p313) target = $region52
        $region51: #{tpu_custom_call.1} parent=47 // pred_region
          %317 = dma.done [#allocation5], 16
        $region52: #{tpu_custom_call.1} parent=47 // pred_fallthru
          _
        // Predicated region
        $region53: #{tpu_custom_call.1} parent=47 // pred_check
          %p318 = pneg %p177
        $region54: #{tpu_custom_call.1} parent=47 // pred_check_branch
          %320 = sbr.rel (%p318) target = $region56
        $region55: #{tpu_custom_call.1} parent=47 // pred_region
          %322 = dma.done [#allocation8], 16
        $region56: #{tpu_custom_call.1} parent=47 // pred_fallthru
          _
        %s323 = smul.u32 16, %s29
        %p324 = scmp.lt.s32.totalorder %s28, 1
        %s325 = scalar_select %p324, %s28, 1
        %p326 = scmp.lt.s32.totalorder %s323, 15
        %s327 = scalar_select %p326, %s323, 15
        %s328 = smul.addr %s325, 16
        %s329 = sadd.s32 %s327, %s328
        %s330 = smul.addr %s329, 8
        %s331 = scalar_lea.vmem %s0, %s330
        %p332 = pneg %p65
        %p333 = pneg %p62
        %s334 = smul.u32 16, %s30
        %p335 = scmp.lt.s32.totalorder %s28, 1
        %s336 = scalar_select %p335, %s28, 1
        %p337 = scmp.lt.s32.totalorder %s334, 15
        %s338 = scalar_select %p337, %s334, 15
        %s339 = smul.addr %s336, 16
        %s340 = sadd.s32 %s338, %s339
        %s341 = smul.addr %s340, 8
        %s342 = scalar_lea.vmem %s1, %s341
        %p343 = pneg %p93
        %p344 = pneg %p90
        %p345 = pneg %p114
        %p346 = pneg %p111
        %p347 = pneg %p135
        %p348 = pneg %p132
        %p349 = pneg %p156
        %p350 = pneg %p153
        %p351 = pneg %p177
        %p352 = pneg %p174
        %p353 = pneg %p198
        %p354 = pneg %p195
        %p355 = pneg %p228
        %p356 = pneg %p225
        %s357 = sand.u32 %s215, 1
        %s358 = scalar_lea.sflag [#allocation6], %s357
        %s359 = sand.u32 %s215, 1
        %s360 = smul.addr %s359, 512
        %s361 = scalar_lea.vmem [#allocation9], %s360
        %s362 = smul.u32 16, %s29
        %p363 = scmp.lt.s32.totalorder %s28, 1
        %s364 = scalar_select %p363, %s28, 1
        %p365 = scmp.lt.s32.totalorder %s362, 15
        %s366 = scalar_select %p365, %s362, 15
        %s367 = smul.addr %s364, 16
        %s368 = sadd.s32 %s366, %s367
        %s369 = smul.addr %s368, 8
        %s370 = scalar_lea.vmem %s0, %s369
        %s371 = smul.u32 16, %s29
        %s372 = smul.u32 16, %s30
        %p373 = scmp.lt.s32.totalorder %s28, 1
        %s374 = scalar_select %p373, %s28, 1
        %p375 = scmp.lt.s32.totalorder %s372, 15
        %s376 = scalar_select %p375, %s372, 15
        %s377 = smul.addr %s374, 16
        %s378 = sadd.s32 %s376, %s377
        %s379 = smul.addr %s378, 8
        %s380 = scalar_lea.vmem %s1, %s379
        %s381 = smul.u32 16, %s30
        %s382 = smul.u32 16, %s29
        %p383 = scmp.eq.s32.totalorder %s30, 0
        // Predicated region
        $region57: #{tpu_custom_call.1} parent=47 // pred_check
          %p384 = pneg %p383
        $region58: #{tpu_custom_call.1} parent=47 // pred_check_branch
          %386 = sbr.rel (%p384) target = $region60
        $region59: #{tpu_custom_call.1} parent=47 // pred_region
          %v387 = vld [vmem:[%s370] sm:$0xff]
          %v388 = vld [vmem:[%s370 + $0x8] sm:$0xff]
          %v389 = vld [vmem:[%s370 + $0x10] sm:$0xff]
          %v390 = vld [vmem:[%s370 + $0x18] sm:$0xff]
          %v391 = vld [vmem:[%s370 + $0x20] sm:$0xff]
          %v392 = vld [vmem:[%s370 + $0x28] sm:$0xff]
          %v393 = vld [vmem:[%s370 + $0x30] sm:$0xff]
          %v394 = vld [vmem:[%s370 + $0x38] sm:$0xff]
          %v395 = vld [vmem:[%s370 + $0x40] sm:$0xff]
          %v396 = vld [vmem:[%s370 + $0x48] sm:$0xff]
          %v397 = vld [vmem:[%s370 + $0x50] sm:$0xff]
          %v398 = vld [vmem:[%s370 + $0x58] sm:$0xff]
          %v399 = vld [vmem:[%s370 + $0x60] sm:$0xff]
          %v400 = vld [vmem:[%s370 + $0x68] sm:$0xff]
          %v401 = vld [vmem:[%s370 + $0x70] sm:$0xff]
          %v402 = vld [vmem:[%s370 + $0x78] sm:$0xff]
          %vm403 = vcmp.ge.f32.partialorder %v387, 0.0
          %vm404 = vcmp.ge.f32.partialorder %v388, 0.0
          %vm405 = vcmp.ge.f32.partialorder %v389, 0.0
          %vm406 = vcmp.ge.f32.partialorder %v390, 0.0
          %vm407 = vcmp.ge.f32.partialorder %v391, 0.0
          %vm408 = vcmp.ge.f32.partialorder %v392, 0.0
          %vm409 = vcmp.ge.f32.partialorder %v393, 0.0
          %vm410 = vcmp.ge.f32.partialorder %v394, 0.0
          %vm411 = vcmp.ge.f32.partialorder %v395, 0.0
          %vm412 = vcmp.ge.f32.partialorder %v396, 0.0
          %vm413 = vcmp.ge.f32.partialorder %v397, 0.0
          %vm414 = vcmp.ge.f32.partialorder %v398, 0.0
          %vm415 = vcmp.ge.f32.partialorder %v399, 0.0
          %vm416 = vcmp.ge.f32.partialorder %v400, 0.0
          %vm417 = vcmp.ge.f32.partialorder %v401, 0.0
          %vm418 = vcmp.ge.f32.partialorder %v402, 0.0
          %v419 = vmul.f32 %v387, 0.01
          %v420 = vmul.f32 %v388, 0.01
          %v421 = vmul.f32 %v389, 0.01
          %v422 = vmul.f32 %v390, 0.01
          %v423 = vmul.f32 %v391, 0.01
          %v424 = vmul.f32 %v392, 0.01
          %v425 = vmul.f32 %v393, 0.01
          %v426 = vmul.f32 %v394, 0.01
          %v427 = vmul.f32 %v395, 0.01
          %v428 = vmul.f32 %v396, 0.01
          %v429 = vmul.f32 %v397, 0.01
          %v430 = vmul.f32 %v398, 0.01
          %v431 = vmul.f32 %v399, 0.01
          %v432 = vmul.f32 %v400, 0.01
          %v433 = vmul.f32 %v401, 0.01
          %v434 = vmul.f32 %v402, 0.01
          %v435 = vsel %vm403, %v387, %v419
          %v436 = vsel %vm404, %v388, %v420
          %v437 = vsel %vm405, %v389, %v421
          %v438 = vsel %vm406, %v390, %v422
          %v439 = vsel %vm407, %v391, %v423
          %v440 = vsel %vm408, %v392, %v424
          %v441 = vsel %vm409, %v393, %v425
          %v442 = vsel %vm410, %v394, %v426
          %v443 = vsel %vm411, %v395, %v427
          %v444 = vsel %vm412, %v396, %v428
          %v445 = vsel %vm413, %v397, %v429
          %v446 = vsel %vm414, %v398, %v430
          %v447 = vsel %vm415, %v399, %v431
          %v448 = vsel %vm416, %v400, %v432
          %v449 = vsel %vm417, %v401, %v433
          %v450 = vsel %vm418, %v402, %v434
          %v451 = vld [vmem:[%s2] sm:$0xff]
          %v452 = vld [vmem:[%s2 + $0x8] sm:$0xff]
          %v453 = vld [vmem:[%s2 + $0x10] sm:$0xff]
          %v454 = vld [vmem:[%s2 + $0x18] sm:$0xff]
          %v455 = vld [vmem:[#allocation4] sm:$0x1]
          %v457 = vperm.slane %v455, 0
          %vm459 = vcmask 261120
          %v461 = vsel %vm459, %v435, 0
          %v464 = vsel %vm459, %v436, 0
          %v467 = vsel %vm459, %v437, 0
          %v470 = vsel %vm459, %v438, 0
          %v473 = vsel %vm459, %v439, 0
          %v476 = vsel %vm459, %v440, 0
          %v479 = vsel %vm459, %v441, 0
          %v482 = vsel %vm459, %v442, 0
          %v485 = vsel %vm459, %v443, 0
          %v488 = vsel %vm459, %v444, 0
          %v491 = vsel %vm459, %v445, 0
          %v494 = vsel %vm459, %v446, 0
          %v497 = vsel %vm459, %v447, 0
          %v500 = vsel %vm459, %v448, 0
          %v503 = vsel %vm459, %v449, 0
          %v506 = vsel %vm459, %v450, 0
          %508 = vmatpush.msra.mxu0 0.0
          %509 = vmatpush.msra.mxu0 0.0
          %510 = vmatpush.msra.mxu0 0.0
          %511 = vmatpush.msra.mxu0 0.0
          %512 = vmatpush.msra.mxu0 0.0
          %513 = vmatpush.msra.mxu0 0.0
          %514 = vmatpush.msra.mxu0 0.0
          %515 = vmatpush.msra.mxu0 0.0
          %516 = vmatpush.msra.mxu0 0.0
          %517 = vmatpush.msra.mxu0 0.0
          %518 = vmatpush.msra.mxu0 0.0
          %519 = vmatpush.msra.mxu0 0.0
          %520 = vmatpush.msra.mxu0 %v454
          %521 = vmatpush.msra.mxu0 %v453
          %522 = vmatpush.msra.mxu0 %v452
          %523 = vmatpush.msra.mxu0 %v451
          %524 = vmatmul.f32.gmra.mxu0 %v461
          %v525 = vpop.f32.mrf.mxu0
          %v526 = vadd.f32 %v457, %v525
          %527 = vmatmul.f32.gmra.mxu0 %v464
          %v528 = vpop.f32.mrf.mxu0
          %v529 = vadd.f32 %v457, %v528
          %530 = vmatmul.f32.gmra.mxu0 %v467
          %v531 = vpop.f32.mrf.mxu0
          %v532 = vadd.f32 %v457, %v531
          %533 = vmatmul.f32.gmra.mxu0 %v470
          %v534 = vpop.f32.mrf.mxu0
          %v535 = vadd.f32 %v457, %v534
          %536 = vmatmul.f32.gmra.mxu0 %v473
          %v537 = vpop.f32.mrf.mxu0
          %v538 = vadd.f32 %v457, %v537
          %539 = vmatmul.f32.gmra.mxu0 %v476
          %v540 = vpop.f32.mrf.mxu0
          %v541 = vadd.f32 %v457, %v540
          %542 = vmatmul.f32.gmra.mxu0 %v479
          %v543 = vpop.f32.mrf.mxu0
          %v544 = vadd.f32 %v457, %v543
          %545 = vmatmul.f32.gmra.mxu0 %v482
          %v546 = vpop.f32.mrf.mxu0
          %v547 = vadd.f32 %v457, %v546
          %548 = vmatmul.f32.gmra.mxu0 %v485
          %v549 = vpop.f32.mrf.mxu0
          %v550 = vadd.f32 %v457, %v549
          %551 = vmatmul.f32.gmra.mxu0 %v488
          %v552 = vpop.f32.mrf.mxu0
          %v553 = vadd.f32 %v457, %v552
          %554 = vmatmul.f32.gmra.mxu0 %v491
          %v555 = vpop.f32.mrf.mxu0
          %v556 = vadd.f32 %v457, %v555
          %557 = vmatmul.f32.gmra.mxu0 %v494
          %v558 = vpop.f32.mrf.mxu0
          %v559 = vadd.f32 %v457, %v558
          %560 = vmatmul.f32.gmra.mxu0 %v497
          %v561 = vpop.f32.mrf.mxu0
          %v562 = vadd.f32 %v457, %v561
          %563 = vmatmul.f32.gmra.mxu0 %v500
          %v564 = vpop.f32.mrf.mxu0
          %v565 = vadd.f32 %v457, %v564
          %566 = vmatmul.f32.gmra.mxu0 %v503
          %v567 = vpop.f32.mrf.mxu0
          %v568 = vadd.f32 %v457, %v567
          %569 = vmatmul.f32.gmra.mxu0 %v506
          %v570 = vpop.f32.mrf.mxu0
          %v571 = vadd.f32 %v457, %v570
          %572 = vdwg.mxu0
          %v573 = vld [vmem:[%s6] sm:$0xff]
          %v574 = vld [vmem:[%s6 + $0x8] sm:$0xff]
          %v575 = vld [vmem:[%s6 + $0x10] sm:$0xff]
          %v576 = vld [vmem:[%s6 + $0x18] sm:$0xff]
          %v577 = vld [vmem:[%s6 + $0x20] sm:$0xff]
          %v578 = vld [vmem:[%s6 + $0x28] sm:$0xff]
          %v579 = vld [vmem:[%s6 + $0x30] sm:$0xff]
          %v580 = vld [vmem:[%s6 + $0x38] sm:$0xff]
          %v581 = vld [vmem:[%s6 + $0x40] sm:$0xff]
          %v582 = vld [vmem:[%s6 + $0x48] sm:$0xff]
          %v583 = vld [vmem:[%s6 + $0x50] sm:$0xff]
          %v584 = vld [vmem:[%s6 + $0x58] sm:$0xff]
          %v585 = vld [vmem:[%s6 + $0x60] sm:$0xff]
          %v586 = vld [vmem:[%s6 + $0x68] sm:$0xff]
          %v587 = vld [vmem:[%s6 + $0x70] sm:$0xff]
          %v588 = vld [vmem:[%s6 + $0x78] sm:$0xff]
          %v589 = vld [vmem:[%s6 + $0x80] sm:$0xff]
          %v590 = vld [vmem:[%s6 + $0x88] sm:$0xff]
          %v591 = vld [vmem:[%s6 + $0x90] sm:$0xff]
          %v592 = vld [vmem:[%s6 + $0x98] sm:$0xff]
          %v593 = vld [vmem:[%s6 + $0xa0] sm:$0xff]
          %v594 = vld [vmem:[%s6 + $0xa8] sm:$0xff]
          %v595 = vld [vmem:[%s6 + $0xb0] sm:$0xff]
          %v596 = vld [vmem:[%s6 + $0xb8] sm:$0xff]
          %v597 = vld [vmem:[%s6 + $0xc0] sm:$0xff]
          %v598 = vld [vmem:[%s6 + $0xc8] sm:$0xff]
          %v599 = vld [vmem:[%s6 + $0xd0] sm:$0xff]
          %v600 = vld [vmem:[%s6 + $0xd8] sm:$0xff]
          %v601 = vld [vmem:[%s6 + $0xe0] sm:$0xff]
          %v602 = vld [vmem:[%s6 + $0xe8] sm:$0xff]
          %v603 = vld [vmem:[%s6 + $0xf0] sm:$0xff]
          %v604 = vld [vmem:[%s6 + $0xf8] sm:$0xff]
          %v605 = vld [vmem:[%s6 + $0x100] sm:$0xff]
          %v606 = vld [vmem:[%s6 + $0x108] sm:$0xff]
          %v607 = vld [vmem:[%s6 + $0x110] sm:$0xff]
          %v608 = vld [vmem:[%s6 + $0x118] sm:$0xff]
          %v609 = vld [vmem:[%s6 + $0x120] sm:$0xff]
          %v610 = vld [vmem:[%s6 + $0x128] sm:$0xff]
          %v611 = vld [vmem:[%s6 + $0x130] sm:$0xff]
          %v612 = vld [vmem:[%s6 + $0x138] sm:$0xff]
          %v613 = vld [vmem:[%s6 + $0x140] sm:$0xff]
          %v614 = vld [vmem:[%s6 + $0x148] sm:$0xff]
          %v615 = vld [vmem:[%s6 + $0x150] sm:$0xff]
          %v616 = vld [vmem:[%s6 + $0x158] sm:$0xff]
          %v617 = vld [vmem:[%s6 + $0x160] sm:$0xff]
          %v618 = vld [vmem:[%s6 + $0x168] sm:$0xff]
          %v619 = vld [vmem:[%s6 + $0x170] sm:$0xff]
          %v620 = vld [vmem:[%s6 + $0x178] sm:$0xff]
          %v621 = vld [vmem:[%s6 + $0x180] sm:$0xff]
          %v622 = vld [vmem:[%s6 + $0x188] sm:$0xff]
          %v623 = vld [vmem:[%s6 + $0x190] sm:$0xff]
          %v624 = vld [vmem:[%s6 + $0x198] sm:$0xff]
          %v625 = vld [vmem:[%s6 + $0x1a0] sm:$0xff]
          %v626 = vld [vmem:[%s6 + $0x1a8] sm:$0xff]
          %v627 = vld [vmem:[%s6 + $0x1b0] sm:$0xff]
          %v628 = vld [vmem:[%s6 + $0x1b8] sm:$0xff]
          %v629 = vld [vmem:[%s6 + $0x1c0] sm:$0xff]
          %v630 = vld [vmem:[%s6 + $0x1c8] sm:$0xff]
          %v631 = vld [vmem:[%s6 + $0x1d0] sm:$0xff]
          %v632 = vld [vmem:[%s6 + $0x1d8] sm:$0xff]
          %v633 = vld [vmem:[%s6 + $0x1e0] sm:$0xff]
          %v634 = vld [vmem:[%s6 + $0x1e8] sm:$0xff]
          %v635 = vld [vmem:[%s6 + $0x1f0] sm:$0xff]
          %v636 = vld [vmem:[%s6 + $0x1f8] sm:$0xff]
          %637 = vmatpush.msra.mxu0 %v633
          %638 = vmatpush.msra.mxu0 %v629
          %639 = vmatpush.msra.mxu0 %v625
          %640 = vmatpush.msra.mxu0 %v621
          %641 = vmatpush.msra.mxu0 %v617
          %642 = vmatpush.msra.mxu0 %v613
          %643 = vmatpush.msra.mxu0 %v609
          %644 = vmatpush.msra.mxu0 %v605
          %645 = vmatpush.msra.mxu0 %v601
          %646 = vmatpush.msra.mxu0 %v597
          %647 = vmatpush.msra.mxu0 %v593
          %648 = vmatpush.msra.mxu0 %v589
          %649 = vmatpush.msra.mxu0 %v585
          %650 = vmatpush.msra.mxu0 %v581
          %651 = vmatpush.msra.mxu0 %v577
          %652 = vmatpush.msra.mxu0 %v573
          %653 = vmatmul.f32.gmra.mxu0 %v526
          %v654 = vpop.f32.mrf.mxu0
          %v655 = vadd.f32 0.0, %v654
          %656 = vmatmul.f32.gmra.mxu0 %v529
          %v657 = vpop.f32.mrf.mxu0
          %v658 = vadd.f32 0.0, %v657
          %659 = vmatmul.f32.gmra.mxu0 %v532
          %v660 = vpop.f32.mrf.mxu0
          %v661 = vadd.f32 0.0, %v660
          %662 = vmatmul.f32.gmra.mxu0 %v535
          %v663 = vpop.f32.mrf.mxu0
          %v664 = vadd.f32 0.0, %v663
          %665 = vmatmul.f32.gmra.mxu0 %v538
          %v666 = vpop.f32.mrf.mxu0
          %v667 = vadd.f32 0.0, %v666
          %668 = vmatmul.f32.gmra.mxu0 %v541
          %v669 = vpop.f32.mrf.mxu0
          %v670 = vadd.f32 0.0, %v669
          %671 = vmatmul.f32.gmra.mxu0 %v544
          %v672 = vpop.f32.mrf.mxu0
          %v673 = vadd.f32 0.0, %v672
          %674 = vmatmul.f32.gmra.mxu0 %v547
          %v675 = vpop.f32.mrf.mxu0
          %v676 = vadd.f32 0.0, %v675
          %677 = vmatmul.f32.gmra.mxu0 %v550
          %v678 = vpop.f32.mrf.mxu0
          %v679 = vadd.f32 0.0, %v678
          %680 = vmatmul.f32.gmra.mxu0 %v553
          %v681 = vpop.f32.mrf.mxu0
          %v682 = vadd.f32 0.0, %v681
          %683 = vmatmul.f32.gmra.mxu0 %v556
          %v684 = vpop.f32.mrf.mxu0
          %v685 = vadd.f32 0.0, %v684
          %686 = vmatmul.f32.gmra.mxu0 %v559
          %v687 = vpop.f32.mrf.mxu0
          %v688 = vadd.f32 0.0, %v687
          %689 = vmatmul.f32.gmra.mxu0 %v562
          %v690 = vpop.f32.mrf.mxu0
          %v691 = vadd.f32 0.0, %v690
          %692 = vmatmul.f32.gmra.mxu0 %v565
          %v693 = vpop.f32.mrf.mxu0
          %v694 = vadd.f32 0.0, %v693
          %695 = vmatmul.f32.gmra.mxu0 %v568
          %v696 = vpop.f32.mrf.mxu0
          %v697 = vadd.f32 0.0, %v696
          %698 = vmatmul.f32.gmra.mxu0 %v571
          %v699 = vpop.f32.mrf.mxu0
          %v700 = vadd.f32 0.0, %v699
          %701 = vdwg.mxu0
          %702 = vmatpush.msra.mxu0 %v634
          %703 = vmatpush.msra.mxu0 %v630
          %704 = vmatpush.msra.mxu0 %v626
          %705 = vmatpush.msra.mxu0 %v622
          %706 = vmatpush.msra.mxu0 %v618
          %707 = vmatpush.msra.mxu0 %v614
          %708 = vmatpush.msra.mxu0 %v610
          %709 = vmatpush.msra.mxu0 %v606
          %710 = vmatpush.msra.mxu0 %v602
          %711 = vmatpush.msra.mxu0 %v598
          %712 = vmatpush.msra.mxu0 %v594
          %713 = vmatpush.msra.mxu0 %v590
          %714 = vmatpush.msra.mxu0 %v586
          %715 = vmatpush.msra.mxu0 %v582
          %716 = vmatpush.msra.mxu0 %v578
          %717 = vmatpush.msra.mxu0 %v574
          %718 = vmatmul.f32.gmra.mxu0 %v526
          %v719 = vpop.f32.mrf.mxu0
          %v720 = vadd.f32 0.0, %v719
          %721 = vmatmul.f32.gmra.mxu0 %v529
          %v722 = vpop.f32.mrf.mxu0
          %v723 = vadd.f32 0.0, %v722
          %724 = vmatmul.f32.gmra.mxu0 %v532
          %v725 = vpop.f32.mrf.mxu0
          %v726 = vadd.f32 0.0, %v725
          %727 = vmatmul.f32.gmra.mxu0 %v535
          %v728 = vpop.f32.mrf.mxu0
          %v729 = vadd.f32 0.0, %v728
          %730 = vmatmul.f32.gmra.mxu0 %v538
          %v731 = vpop.f32.mrf.mxu0
          %v732 = vadd.f32 0.0, %v731
          %733 = vmatmul.f32.gmra.mxu0 %v541
          %v734 = vpop.f32.mrf.mxu0
          %v735 = vadd.f32 0.0, %v734
          %736 = vmatmul.f32.gmra.mxu0 %v544
          %v737 = vpop.f32.mrf.mxu0
          %v738 = vadd.f32 0.0, %v737
          %739 = vmatmul.f32.gmra.mxu0 %v547
          %v740 = vpop.f32.mrf.mxu0
          %v741 = vadd.f32 0.0, %v740
          %742 = vmatmul.f32.gmra.mxu0 %v550
          %v743 = vpop.f32.mrf.mxu0
          %v744 = vadd.f32 0.0, %v743
          %745 = vmatmul.f32.gmra.mxu0 %v553
          %v746 = vpop.f32.mrf.mxu0
          %v747 = vadd.f32 0.0, %v746
          %748 = vmatmul.f32.gmra.mxu0 %v556
          %v749 = vpop.f32.mrf.mxu0
          %v750 = vadd.f32 0.0, %v749
          %751 = vmatmul.f32.gmra.mxu0 %v559
          %v752 = vpop.f32.mrf.mxu0
          %v753 = vadd.f32 0.0, %v752
          %754 = vmatmul.f32.gmra.mxu0 %v562
          %v755 = vpop.f32.mrf.mxu0
          %v756 = vadd.f32 0.0, %v755
          %757 = vmatmul.f32.gmra.mxu0 %v565
          %v758 = vpop.f32.mrf.mxu0
          %v759 = vadd.f32 0.0, %v758
          %760 = vmatmul.f32.gmra.mxu0 %v568
          %v761 = vpop.f32.mrf.mxu0
          %v762 = vadd.f32 0.0, %v761
          %763 = vmatmul.f32.gmra.mxu0 %v571
          %v764 = vpop.f32.mrf.mxu0
          %v765 = vadd.f32 0.0, %v764
          %766 = vdwg.mxu0
          %767 = vmatpush.msra.mxu0 %v635
          %768 = vmatpush.msra.mxu0 %v631
          %769 = vmatpush.msra.mxu0 %v627
          %770 = vmatpush.msra.mxu0 %v623
          %771 = vmatpush.msra.mxu0 %v619
          %772 = vmatpush.msra.mxu0 %v615
          %773 = vmatpush.msra.mxu0 %v611
          %774 = vmatpush.msra.mxu0 %v607
          %775 = vmatpush.msra.mxu0 %v603
          %776 = vmatpush.msra.mxu0 %v599
          %777 = vmatpush.msra.mxu0 %v595
          %778 = vmatpush.msra.mxu0 %v591
          %779 = vmatpush.msra.mxu0 %v587
          %780 = vmatpush.msra.mxu0 %v583
          %781 = vmatpush.msra.mxu0 %v579
          %782 = vmatpush.msra.mxu0 %v575
          %783 = vmatmul.f32.gmra.mxu0 %v526
          %v784 = vpop.f32.mrf.mxu0
          %v785 = vadd.f32 0.0, %v784
          %786 = vmatmul.f32.gmra.mxu0 %v529
          %v787 = vpop.f32.mrf.mxu0
          %v788 = vadd.f32 0.0, %v787
          %789 = vmatmul.f32.gmra.mxu0 %v532
          %v790 = vpop.f32.mrf.mxu0
          %v791 = vadd.f32 0.0, %v790
          %792 = vmatmul.f32.gmra.mxu0 %v535
          %v793 = vpop.f32.mrf.mxu0
          %v794 = vadd.f32 0.0, %v793
          %795 = vmatmul.f32.gmra.mxu0 %v538
          %v796 = vpop.f32.mrf.mxu0
          %v797 = vadd.f32 0.0, %v796
          %798 = vmatmul.f32.gmra.mxu0 %v541
          %v799 = vpop.f32.mrf.mxu0
          %v800 = vadd.f32 0.0, %v799
          %801 = vmatmul.f32.gmra.mxu0 %v544
          %v802 = vpop.f32.mrf.mxu0
          %v803 = vadd.f32 0.0, %v802
          %804 = vmatmul.f32.gmra.mxu0 %v547
          %v805 = vpop.f32.mrf.mxu0
          %v806 = vadd.f32 0.0, %v805
          %807 = vmatmul.f32.gmra.mxu0 %v550
          %v808 = vpop.f32.mrf.mxu0
          %v809 = vadd.f32 0.0, %v808
          %810 = vmatmul.f32.gmra.mxu0 %v553
          %v811 = vpop.f32.mrf.mxu0
          %v812 = vadd.f32 0.0, %v811
          %813 = vmatmul.f32.gmra.mxu0 %v556
          %v814 = vpop.f32.mrf.mxu0
          %v815 = vadd.f32 0.0, %v814
          %816 = vmatmul.f32.gmra.mxu0 %v559
          %v817 = vpop.f32.mrf.mxu0
          %v818 = vadd.f32 0.0, %v817
          %819 = vmatmul.f32.gmra.mxu0 %v562
          %v820 = vpop.f32.mrf.mxu0
          %v821 = vadd.f32 0.0, %v820
          %822 = vmatmul.f32.gmra.mxu0 %v565
          %v823 = vpop.f32.mrf.mxu0
          %v824 = vadd.f32 0.0, %v823
          %825 = vmatmul.f32.gmra.mxu0 %v568
          %v826 = vpop.f32.mrf.mxu0
          %v827 = vadd.f32 0.0, %v826
          %828 = vmatmul.f32.gmra.mxu0 %v571
          %v829 = vpop.f32.mrf.mxu0
          %v830 = vadd.f32 0.0, %v829
          %831 = vdwg.mxu0
          %832 = vmatpush.msra.mxu0 %v636
          %833 = vmatpush.msra.mxu0 %v632
          %834 = vmatpush.msra.mxu0 %v628
          %835 = vmatpush.msra.mxu0 %v624
          %836 = vmatpush.msra.mxu0 %v620
          %837 = vmatpush.msra.mxu0 %v616
          %838 = vmatpush.msra.mxu0 %v612
          %839 = vmatpush.msra.mxu0 %v608
          %840 = vmatpush.msra.mxu0 %v604
          %841 = vmatpush.msra.mxu0 %v600
          %842 = vmatpush.msra.mxu0 %v596
          %843 = vmatpush.msra.mxu0 %v592
          %844 = vmatpush.msra.mxu0 %v588
          %845 = vmatpush.msra.mxu0 %v584
          %846 = vmatpush.msra.mxu0 %v580
          %847 = vmatpush.msra.mxu0 %v576
          %848 = vmatmul.f32.gmra.mxu0 %v526
          %v849 = vpop.f32.mrf.mxu0
          %v850 = vadd.f32 0.0, %v849
          %851 = vmatmul.f32.gmra.mxu0 %v529
          %v852 = vpop.f32.mrf.mxu0
          %v853 = vadd.f32 0.0, %v852
          %854 = vmatmul.f32.gmra.mxu0 %v532
          %v855 = vpop.f32.mrf.mxu0
          %v856 = vadd.f32 0.0, %v855
          %857 = vmatmul.f32.gmra.mxu0 %v535
          %v858 = vpop.f32.mrf.mxu0
          %v859 = vadd.f32 0.0, %v858
          %860 = vmatmul.f32.gmra.mxu0 %v538
          %v861 = vpop.f32.mrf.mxu0
          %v862 = vadd.f32 0.0, %v861
          %863 = vmatmul.f32.gmra.mxu0 %v541
          %v864 = vpop.f32.mrf.mxu0
          %v865 = vadd.f32 0.0, %v864
          %866 = vmatmul.f32.gmra.mxu0 %v544
          %v867 = vpop.f32.mrf.mxu0
          %v868 = vadd.f32 0.0, %v867
          %869 = vmatmul.f32.gmra.mxu0 %v547
          %v870 = vpop.f32.mrf.mxu0
          %v871 = vadd.f32 0.0, %v870
          %872 = vmatmul.f32.gmra.mxu0 %v550
          %v873 = vpop.f32.mrf.mxu0
          %v874 = vadd.f32 0.0, %v873
          %875 = vmatmul.f32.gmra.mxu0 %v553
          %v876 = vpop.f32.mrf.mxu0
          %v877 = vadd.f32 0.0, %v876
          %878 = vmatmul.f32.gmra.mxu0 %v556
          %v879 = vpop.f32.mrf.mxu0
          %v880 = vadd.f32 0.0, %v879
          %881 = vmatmul.f32.gmra.mxu0 %v559
          %v882 = vpop.f32.mrf.mxu0
          %v883 = vadd.f32 0.0, %v882
          %884 = vmatmul.f32.gmra.mxu0 %v562
          %v885 = vpop.f32.mrf.mxu0
          %v886 = vadd.f32 0.0, %v885
          %887 = vmatmul.f32.gmra.mxu0 %v565
          %v888 = vpop.f32.mrf.mxu0
          %v889 = vadd.f32 0.0, %v888
          %890 = vmatmul.f32.gmra.mxu0 %v568
          %v891 = vpop.f32.mrf.mxu0
          %v892 = vadd.f32 0.0, %v891
          %893 = vmatmul.f32.gmra.mxu0 %v571
          %v894 = vpop.f32.mrf.mxu0
          %v895 = vadd.f32 0.0, %v894
          %896 = vdwg.mxu0
          %897 = vst [vmem:[#allocation2] sm:$0xff] %v655
          %898 = vst [vmem:[#allocation2 + $0x8] sm:$0xff] %v720
          %899 = vst [vmem:[#allocation2 + $0x10] sm:$0xff] %v785
          %900 = vst [vmem:[#allocation2 + $0x18] sm:$0xff] %v850
          %901 = vst [vmem:[#allocation2 + $0x20] sm:$0xff] %v658
          %902 = vst [vmem:[#allocation2 + $0x28] sm:$0xff] %v723
          %903 = vst [vmem:[#allocation2 + $0x30] sm:$0xff] %v788
          %904 = vst [vmem:[#allocation2 + $0x38] sm:$0xff] %v853
          %905 = vst [vmem:[#allocation2 + $0x40] sm:$0xff] %v661
          %906 = vst [vmem:[#allocation2 + $0x48] sm:$0xff] %v726
          %907 = vst [vmem:[#allocation2 + $0x50] sm:$0xff] %v791
          %908 = vst [vmem:[#allocation2 + $0x58] sm:$0xff] %v856
          %909 = vst [vmem:[#allocation2 + $0x60] sm:$0xff] %v664
          %910 = vst [vmem:[#allocation2 + $0x68] sm:$0xff] %v729
          %911 = vst [vmem:[#allocation2 + $0x70] sm:$0xff] %v794
          %912 = vst [vmem:[#allocation2 + $0x78] sm:$0xff] %v859
          %913 = vst [vmem:[#allocation2 + $0x80] sm:$0xff] %v667
          %914 = vst [vmem:[#allocation2 + $0x88] sm:$0xff] %v732
          %915 = vst [vmem:[#allocation2 + $0x90] sm:$0xff] %v797
          %916 = vst [vmem:[#allocation2 + $0x98] sm:$0xff] %v862
          %917 = vst [vmem:[#allocation2 + $0xa0] sm:$0xff] %v670
          %918 = vst [vmem:[#allocation2 + $0xa8] sm:$0xff] %v735
          %919 = vst [vmem:[#allocation2 + $0xb0] sm:$0xff] %v800
          %920 = vst [vmem:[#allocation2 + $0xb8] sm:$0xff] %v865
          %921 = vst [vmem:[#allocation2 + $0xc0] sm:$0xff] %v673
          %922 = vst [vmem:[#allocation2 + $0xc8] sm:$0xff] %v738
          %923 = vst [vmem:[#allocation2 + $0xd0] sm:$0xff] %v803
          %924 = vst [vmem:[#allocation2 + $0xd8] sm:$0xff] %v868
          %925 = vst [vmem:[#allocation2 + $0xe0] sm:$0xff] %v676
          %926 = vst [vmem:[#allocation2 + $0xe8] sm:$0xff] %v741
          %927 = vst [vmem:[#allocation2 + $0xf0] sm:$0xff] %v806
          %928 = vst [vmem:[#allocation2 + $0xf8] sm:$0xff] %v871
          %929 = vst [vmem:[#allocation2 + $0x100] sm:$0xff] %v679
          %930 = vst [vmem:[#allocation2 + $0x108] sm:$0xff] %v744
          %931 = vst [vmem:[#allocation2 + $0x110] sm:$0xff] %v809
          %932 = vst [vmem:[#allocation2 + $0x118] sm:$0xff] %v874
          %933 = vst [vmem:[#allocation2 + $0x120] sm:$0xff] %v682
          %934 = vst [vmem:[#allocation2 + $0x128] sm:$0xff] %v747
          %935 = vst [vmem:[#allocation2 + $0x130] sm:$0xff] %v812
          %936 = vst [vmem:[#allocation2 + $0x138] sm:$0xff] %v877
          %937 = vst [vmem:[#allocation2 + $0x140] sm:$0xff] %v685
          %938 = vst [vmem:[#allocation2 + $0x148] sm:$0xff] %v750
          %939 = vst [vmem:[#allocation2 + $0x150] sm:$0xff] %v815
          %940 = vst [vmem:[#allocation2 + $0x158] sm:$0xff] %v880
          %941 = vst [vmem:[#allocation2 + $0x160] sm:$0xff] %v688
          %942 = vst [vmem:[#allocation2 + $0x168] sm:$0xff] %v753
          %943 = vst [vmem:[#allocation2 + $0x170] sm:$0xff] %v818
          %944 = vst [vmem:[#allocation2 + $0x178] sm:$0xff] %v883
          %945 = vst [vmem:[#allocation2 + $0x180] sm:$0xff] %v691
          %946 = vst [vmem:[#allocation2 + $0x188] sm:$0xff] %v756
          %947 = vst [vmem:[#allocation2 + $0x190] sm:$0xff] %v821
          %948 = vst [vmem:[#allocation2 + $0x198] sm:$0xff] %v886
          %949 = vst [vmem:[#allocation2 + $0x1a0] sm:$0xff] %v694
          %950 = vst [vmem:[#allocation2 + $0x1a8] sm:$0xff] %v759
          %951 = vst [vmem:[#allocation2 + $0x1b0] sm:$0xff] %v824
          %952 = vst [vmem:[#allocation2 + $0x1b8] sm:$0xff] %v889
          %953 = vst [vmem:[#allocation2 + $0x1c0] sm:$0xff] %v697
          %954 = vst [vmem:[#allocation2 + $0x1c8] sm:$0xff] %v762
          %955 = vst [vmem:[#allocation2 + $0x1d0] sm:$0xff] %v827
          %956 = vst [vmem:[#allocation2 + $0x1d8] sm:$0xff] %v892
          %957 = vst [vmem:[#allocation2 + $0x1e0] sm:$0xff] %v700
          %958 = vst [vmem:[#allocation2 + $0x1e8] sm:$0xff] %v765
          %959 = vst [vmem:[#allocation2 + $0x1f0] sm:$0xff] %v830
          %960 = vst [vmem:[#allocation2 + $0x1f8] sm:$0xff] %v895
        $region60: #{tpu_custom_call.1} parent=47 // pred_fallthru
          _
        %p961 = scmp.eq.s32.totalorder %s29, 0
        // Predicated region
        $region61: #{tpu_custom_call.1} parent=47 // pred_check
          %p962 = pneg %p961
        $region62: #{tpu_custom_call.1} parent=47 // pred_check_branch
          %964 = sbr.rel (%p962) target = $region64
        $region63: #{tpu_custom_call.1} parent=47 // pred_region
          %v965 = vld [vmem:[%s380] sm:$0xff]
          %v966 = vld [vmem:[%s380 + $0x8] sm:$0xff]
          %v967 = vld [vmem:[%s380 + $0x10] sm:$0xff]
          %v968 = vld [vmem:[%s380 + $0x18] sm:$0xff]
          %v969 = vld [vmem:[%s380 + $0x20] sm:$0xff]
          %v970 = vld [vmem:[%s380 + $0x28] sm:$0xff]
          %v971 = vld [vmem:[%s380 + $0x30] sm:$0xff]
          %v972 = vld [vmem:[%s380 + $0x38] sm:$0xff]
          %v973 = vld [vmem:[%s380 + $0x40] sm:$0xff]
          %v974 = vld [vmem:[%s380 + $0x48] sm:$0xff]
          %v975 = vld [vmem:[%s380 + $0x50] sm:$0xff]
          %v976 = vld [vmem:[%s380 + $0x58] sm:$0xff]
          %v977 = vld [vmem:[%s380 + $0x60] sm:$0xff]
          %v978 = vld [vmem:[%s380 + $0x68] sm:$0xff]
          %v979 = vld [vmem:[%s380 + $0x70] sm:$0xff]
          %v980 = vld [vmem:[%s380 + $0x78] sm:$0xff]
          %vm981 = vcmp.ge.f32.partialorder %v965, 0.0
          %vm982 = vcmp.ge.f32.partialorder %v966, 0.0
          %vm983 = vcmp.ge.f32.partialorder %v967, 0.0
          %vm984 = vcmp.ge.f32.partialorder %v968, 0.0
          %vm985 = vcmp.ge.f32.partialorder %v969, 0.0
          %vm986 = vcmp.ge.f32.partialorder %v970, 0.0
          %vm987 = vcmp.ge.f32.partialorder %v971, 0.0
          %vm988 = vcmp.ge.f32.partialorder %v972, 0.0
          %vm989 = vcmp.ge.f32.partialorder %v973, 0.0
          %vm990 = vcmp.ge.f32.partialorder %v974, 0.0
          %vm991 = vcmp.ge.f32.partialorder %v975, 0.0
          %vm992 = vcmp.ge.f32.partialorder %v976, 0.0
          %vm993 = vcmp.ge.f32.partialorder %v977, 0.0
          %vm994 = vcmp.ge.f32.partialorder %v978, 0.0
          %vm995 = vcmp.ge.f32.partialorder %v979, 0.0
          %vm996 = vcmp.ge.f32.partialorder %v980, 0.0
          %v997 = vmul.f32 %v965, 0.01
          %v998 = vmul.f32 %v966, 0.01
          %v999 = vmul.f32 %v967, 0.01
          %v1000 = vmul.f32 %v968, 0.01
          %v1001 = vmul.f32 %v969, 0.01
          %v1002 = vmul.f32 %v970, 0.01
          %v1003 = vmul.f32 %v971, 0.01
          %v1004 = vmul.f32 %v972, 0.01
          %v1005 = vmul.f32 %v973, 0.01
          %v1006 = vmul.f32 %v974, 0.01
          %v1007 = vmul.f32 %v975, 0.01
          %v1008 = vmul.f32 %v976, 0.01
          %v1009 = vmul.f32 %v977, 0.01
          %v1010 = vmul.f32 %v978, 0.01
          %v1011 = vmul.f32 %v979, 0.01
          %v1012 = vmul.f32 %v980, 0.01
          %v1013 = vsel %vm981, %v965, %v997
          %v1014 = vsel %vm982, %v966, %v998
          %v1015 = vsel %vm983, %v967, %v999
          %v1016 = vsel %vm984, %v968, %v1000
          %v1017 = vsel %vm985, %v969, %v1001
          %v1018 = vsel %vm986, %v970, %v1002
          %v1019 = vsel %vm987, %v971, %v1003
          %v1020 = vsel %vm988, %v972, %v1004
          %v1021 = vsel %vm989, %v973, %v1005
          %v1022 = vsel %vm990, %v974, %v1006
          %v1023 = vsel %vm991, %v975, %v1007
          %v1024 = vsel %vm992, %v976, %v1008
          %v1025 = vsel %vm993, %v977, %v1009
          %v1026 = vsel %vm994, %v978, %v1010
          %v1027 = vsel %vm995, %v979, %v1011
          %v1028 = vsel %vm996, %v980, %v1012
          %v1029 = vld [vmem:[%s4] sm:$0xff]
          %v1030 = vld [vmem:[%s4 + $0x8] sm:$0xff]
          %v1031 = vld [vmem:[%s4 + $0x10] sm:$0xff]
          %v1032 = vld [vmem:[%s4 + $0x18] sm:$0xff]
          %v1033 = vld [vmem:[#allocation7] sm:$0x1]
          %v1035 = vperm.slane %v1033, 0
          %vm1037 = vcmask 261120
          %v1039 = vsel %vm1037, %v1013, 0
          %v1042 = vsel %vm1037, %v1014, 0
          %v1045 = vsel %vm1037, %v1015, 0
          %v1048 = vsel %vm1037, %v1016, 0
          %v1051 = vsel %vm1037, %v1017, 0
          %v1054 = vsel %vm1037, %v1018, 0
          %v1057 = vsel %vm1037, %v1019, 0
          %v1060 = vsel %vm1037, %v1020, 0
          %v1063 = vsel %vm1037, %v1021, 0
          %v1066 = vsel %vm1037, %v1022, 0
          %v1069 = vsel %vm1037, %v1023, 0
          %v1072 = vsel %vm1037, %v1024, 0
          %v1075 = vsel %vm1037, %v1025, 0
          %v1078 = vsel %vm1037, %v1026, 0
          %v1081 = vsel %vm1037, %v1027, 0
          %v1084 = vsel %vm1037, %v1028, 0
          %1086 = vmatpush.msra.mxu0 0.0
          %1087 = vmatpush.msra.mxu0 0.0
          %1088 = vmatpush.msra.mxu0 0.0
          %1089 = vmatpush.msra.mxu0 0.0
          %1090 = vmatpush.msra.mxu0 0.0
          %1091 = vmatpush.msra.mxu0 0.0
          %1092 = vmatpush.msra.mxu0 0.0
          %1093 = vmatpush.msra.mxu0 0.0
          %1094 = vmatpush.msra.mxu0 0.0
          %1095 = vmatpush.msra.mxu0 0.0
          %1096 = vmatpush.msra.mxu0 0.0
          %1097 = vmatpush.msra.mxu0 0.0
          %1098 = vmatpush.msra.mxu0 %v1032
          %1099 = vmatpush.msra.mxu0 %v1031
          %1100 = vmatpush.msra.mxu0 %v1030
          %1101 = vmatpush.msra.mxu0 %v1029
          %1102 = vmatmul.f32.gmra.mxu0 %v1039
          %v1103 = vpop.f32.mrf.mxu0
          %v1104 = vadd.f32 %v1035, %v1103
          %1105 = vmatmul.f32.gmra.mxu0 %v1042
          %v1106 = vpop.f32.mrf.mxu0
          %v1107 = vadd.f32 %v1035, %v1106
          %1108 = vmatmul.f32.gmra.mxu0 %v1045
          %v1109 = vpop.f32.mrf.mxu0
          %v1110 = vadd.f32 %v1035, %v1109
          %1111 = vmatmul.f32.gmra.mxu0 %v1048
          %v1112 = vpop.f32.mrf.mxu0
          %v1113 = vadd.f32 %v1035, %v1112
          %1114 = vmatmul.f32.gmra.mxu0 %v1051
          %v1115 = vpop.f32.mrf.mxu0
          %v1116 = vadd.f32 %v1035, %v1115
          %1117 = vmatmul.f32.gmra.mxu0 %v1054
          %v1118 = vpop.f32.mrf.mxu0
          %v1119 = vadd.f32 %v1035, %v1118
          %1120 = vmatmul.f32.gmra.mxu0 %v1057
          %v1121 = vpop.f32.mrf.mxu0
          %v1122 = vadd.f32 %v1035, %v1121
          %1123 = vmatmul.f32.gmra.mxu0 %v1060
          %v1124 = vpop.f32.mrf.mxu0
          %v1125 = vadd.f32 %v1035, %v1124
          %1126 = vmatmul.f32.gmra.mxu0 %v1063
          %v1127 = vpop.f32.mrf.mxu0
          %v1128 = vadd.f32 %v1035, %v1127
          %1129 = vmatmul.f32.gmra.mxu0 %v1066
          %v1130 = vpop.f32.mrf.mxu0
          %v1131 = vadd.f32 %v1035, %v1130
          %1132 = vmatmul.f32.gmra.mxu0 %v1069
          %v1133 = vpop.f32.mrf.mxu0
          %v1134 = vadd.f32 %v1035, %v1133
          %1135 = vmatmul.f32.gmra.mxu0 %v1072
          %v1136 = vpop.f32.mrf.mxu0
          %v1137 = vadd.f32 %v1035, %v1136
          %1138 = vmatmul.f32.gmra.mxu0 %v1075
          %v1139 = vpop.f32.mrf.mxu0
          %v1140 = vadd.f32 %v1035, %v1139
          %1141 = vmatmul.f32.gmra.mxu0 %v1078
          %v1142 = vpop.f32.mrf.mxu0
          %v1143 = vadd.f32 %v1035, %v1142
          %1144 = vmatmul.f32.gmra.mxu0 %v1081
          %v1145 = vpop.f32.mrf.mxu0
          %v1146 = vadd.f32 %v1035, %v1145
          %1147 = vmatmul.f32.gmra.mxu0 %v1084
          %v1148 = vpop.f32.mrf.mxu0
          %v1149 = vadd.f32 %v1035, %v1148
          %1150 = vdwg.mxu0
          %1151 = vxpose.xlu0.b32.start [1/16] %v1104, 128
          %1152 = vxpose.xlu0.b32.cont [2/16] %v1107, 128
          %1153 = vxpose.xlu0.b32.cont [3/16] %v1110, 128
          %1154 = vxpose.xlu0.b32.cont [4/16] %v1113, 128
          %1155 = vxpose.xlu0.b32.cont [5/16] %v1116, 128
          %1156 = vxpose.xlu0.b32.cont [6/16] %v1119, 128
          %1157 = vxpose.xlu0.b32.cont [7/16] %v1122, 128
          %1158 = vxpose.xlu0.b32.cont [8/16] %v1125, 128
          %1159 = vxpose.xlu0.b32.cont [9/16] %v1128, 128
          %1160 = vxpose.xlu0.b32.cont [10/16] %v1131, 128
          %1161 = vxpose.xlu0.b32.cont [11/16] %v1134, 128
          %1162 = vxpose.xlu0.b32.cont [12/16] %v1137, 128
          %1163 = vxpose.xlu0.b32.cont [13/16] %v1140, 128
          %1164 = vxpose.xlu0.b32.cont [14/16] %v1143, 128
          %1165 = vxpose.xlu0.b32.cont [15/16] %v1146, 128
          %1166 = vxpose.xlu0.b32.end [16/16] %v1149, 128
          %v1167 = vpop.trf.xlu0
          %v1168 = vpop.trf.xlu0
          %v1169 = vpop.trf.xlu0
          %v1170 = vpop.trf.xlu0
          %v1171 = vpop.trf.xlu0
          %v1172 = vpop.trf.xlu0
          %v1173 = vpop.trf.xlu0
          %v1174 = vpop.trf.xlu0
          %v1175 = vpop.trf.xlu0
          %v1176 = vpop.trf.xlu0
          %v1177 = vpop.trf.xlu0
          %v1178 = vpop.trf.xlu0
          %v1179 = vpop.trf.xlu0
          %v1180 = vpop.trf.xlu0
          %v1181 = vpop.trf.xlu0
          %v1182 = vpop.trf.xlu0
          %s1183 = smul.u32 %s30, 128
          %s1184 = scalar_lea.vmem [#allocation3], %s1183
          %1185 = vst [vmem:[%s1184] sm:$0xff] %v1167
          %1186 = vst [vmem:[%s1184 + $0x8] sm:$0xff] %v1168
          %1187 = vst [vmem:[%s1184 + $0x10] sm:$0xff] %v1169
          %1188 = vst [vmem:[%s1184 + $0x18] sm:$0xff] %v1170
          %1189 = vst [vmem:[%s1184 + $0x20] sm:$0xff] %v1171
          %1190 = vst [vmem:[%s1184 + $0x28] sm:$0xff] %v1172
          %1191 = vst [vmem:[%s1184 + $0x30] sm:$0xff] %v1173
          %1192 = vst [vmem:[%s1184 + $0x38] sm:$0xff] %v1174
          %1193 = vst [vmem:[%s1184 + $0x40] sm:$0xff] %v1175
          %1194 = vst [vmem:[%s1184 + $0x48] sm:$0xff] %v1176
          %1195 = vst [vmem:[%s1184 + $0x50] sm:$0xff] %v1177
          %1196 = vst [vmem:[%s1184 + $0x58] sm:$0xff] %v1178
          %1197 = vst [vmem:[%s1184 + $0x60] sm:$0xff] %v1179
          %1198 = vst [vmem:[%s1184 + $0x68] sm:$0xff] %v1180
          %1199 = vst [vmem:[%s1184 + $0x70] sm:$0xff] %v1181
          %1200 = vst [vmem:[%s1184 + $0x78] sm:$0xff] %v1182
        $region64: #{tpu_custom_call.1} parent=47 // pred_fallthru
          _
        %s1201 = smul.u32 %s30, 128
        %s1202 = scalar_lea.vmem [#allocation3], %s1201
        %v1203 = vld [vmem:[%s1202] sm:$0xff]
        %v1204 = vld [vmem:[%s1202 + $0x8] sm:$0xff]
        %v1205 = vld [vmem:[%s1202 + $0x10] sm:$0xff]
        %v1206 = vld [vmem:[%s1202 + $0x18] sm:$0xff]
        %v1207 = vld [vmem:[%s1202 + $0x20] sm:$0xff]
        %v1208 = vld [vmem:[%s1202 + $0x28] sm:$0xff]
        %v1209 = vld [vmem:[%s1202 + $0x30] sm:$0xff]
        %v1210 = vld [vmem:[%s1202 + $0x38] sm:$0xff]
        %v1211 = vld [vmem:[%s1202 + $0x40] sm:$0xff]
        %v1212 = vld [vmem:[%s1202 + $0x48] sm:$0xff]
        %v1213 = vld [vmem:[%s1202 + $0x50] sm:$0xff]
        %v1214 = vld [vmem:[%s1202 + $0x58] sm:$0xff]
        %v1215 = vld [vmem:[%s1202 + $0x60] sm:$0xff]
        %v1216 = vld [vmem:[%s1202 + $0x68] sm:$0xff]
        %v1217 = vld [vmem:[%s1202 + $0x70] sm:$0xff]
        %v1218 = vld [vmem:[%s1202 + $0x78] sm:$0xff]
        %v1219 = vld [vmem:[#allocation2] sm:$0xff]
        %v1220 = vld [vmem:[#allocation2 + $0x20] sm:$0xff]
        %v1221 = vld [vmem:[#allocation2 + $0x40] sm:$0xff]
        %v1222 = vld [vmem:[#allocation2 + $0x60] sm:$0xff]
        %v1223 = vld [vmem:[#allocation2 + $0x80] sm:$0xff]
        %v1224 = vld [vmem:[#allocation2 + $0xa0] sm:$0xff]
        %v1225 = vld [vmem:[#allocation2 + $0xc0] sm:$0xff]
        %v1226 = vld [vmem:[#allocation2 + $0xe0] sm:$0xff]
        %v1227 = vld [vmem:[#allocation2 + $0x100] sm:$0xff]
        %v1228 = vld [vmem:[#allocation2 + $0x120] sm:$0xff]
        %v1229 = vld [vmem:[#allocation2 + $0x140] sm:$0xff]
        %v1230 = vld [vmem:[#allocation2 + $0x160] sm:$0xff]
        %v1231 = vld [vmem:[#allocation2 + $0x180] sm:$0xff]
        %v1232 = vld [vmem:[#allocation2 + $0x1a0] sm:$0xff]
        %v1233 = vld [vmem:[#allocation2 + $0x1c0] sm:$0xff]
        %v1234 = vld [vmem:[#allocation2 + $0x1e0] sm:$0xff]
        %1235 = vmatpush.msra.mxu0 %v1218
        %1236 = vmatpush.msra.mxu0 %v1217
        %1237 = vmatpush.msra.mxu0 %v1216
        %1238 = vmatpush.msra.mxu0 %v1215
        %1239 = vmatpush.msra.mxu0 %v1214
        %1240 = vmatpush.msra.mxu0 %v1213
        %1241 = vmatpush.msra.mxu0 %v1212
        %1242 = vmatpush.msra.mxu0 %v1211
        %1243 = vmatpush.msra.mxu0 %v1210
        %1244 = vmatpush.msra.mxu0 %v1209
        %1245 = vmatpush.msra.mxu0 %v1208
        %1246 = vmatpush.msra.mxu0 %v1207
        %1247 = vmatpush.msra.mxu0 %v1206
        %1248 = vmatpush.msra.mxu0 %v1205
        %1249 = vmatpush.msra.mxu0 %v1204
        %1250 = vmatpush.msra.mxu0 %v1203
        %1251 = vmatmul.f32.gmra.mxu0 %v1219
        %v1252 = vpop.f32.mrf.mxu0
        %v1253 = vadd.f32 0.0, %v1252
        %1254 = vmatmul.f32.gmra.mxu0 %v1220
        %v1255 = vpop.f32.mrf.mxu0
        %v1256 = vadd.f32 0.0, %v1255
        %1257 = vmatmul.f32.gmra.mxu0 %v1221
        %v1258 = vpop.f32.mrf.mxu0
        %v1259 = vadd.f32 0.0, %v1258
        %1260 = vmatmul.f32.gmra.mxu0 %v1222
        %v1261 = vpop.f32.mrf.mxu0
        %v1262 = vadd.f32 0.0, %v1261
        %1263 = vmatmul.f32.gmra.mxu0 %v1223
        %v1264 = vpop.f32.mrf.mxu0
        %v1265 = vadd.f32 0.0, %v1264
        %1266 = vmatmul.f32.gmra.mxu0 %v1224
        %v1267 = vpop.f32.mrf.mxu0
        %v1268 = vadd.f32 0.0, %v1267
        %1269 = vmatmul.f32.gmra.mxu0 %v1225
        %v1270 = vpop.f32.mrf.mxu0
        %v1271 = vadd.f32 0.0, %v1270
        %1272 = vmatmul.f32.gmra.mxu0 %v1226
        %v1273 = vpop.f32.mrf.mxu0
        %v1274 = vadd.f32 0.0, %v1273
        %1275 = vmatmul.f32.gmra.mxu0 %v1227
        %v1276 = vpop.f32.mrf.mxu0
        %v1277 = vadd.f32 0.0, %v1276
        %1278 = vmatmul.f32.gmra.mxu0 %v1228
        %v1279 = vpop.f32.mrf.mxu0
        %v1280 = vadd.f32 0.0, %v1279
        %1281 = vmatmul.f32.gmra.mxu0 %v1229
        %v1282 = vpop.f32.mrf.mxu0
        %v1283 = vadd.f32 0.0, %v1282
        %1284 = vmatmul.f32.gmra.mxu0 %v1230
        %v1285 = vpop.f32.mrf.mxu0
        %v1286 = vadd.f32 0.0, %v1285
        %1287 = vmatmul.f32.gmra.mxu0 %v1231
        %v1288 = vpop.f32.mrf.mxu0
        %v1289 = vadd.f32 0.0, %v1288
        %1290 = vmatmul.f32.gmra.mxu0 %v1232
        %v1291 = vpop.f32.mrf.mxu0
        %v1292 = vadd.f32 0.0, %v1291
        %1293 = vmatmul.f32.gmra.mxu0 %v1233
        %v1294 = vpop.f32.mrf.mxu0
        %v1295 = vadd.f32 0.0, %v1294
        %1296 = vmatmul.f32.gmra.mxu0 %v1234
        %v1297 = vpop.f32.mrf.mxu0
        %v1298 = vadd.f32 0.0, %v1297
        %1299 = vdwg.mxu0
        %1300 = vst [vmem:[%s361] sm:$0xff] %v1253
        %1301 = vst [vmem:[%s361 + $0x8] sm:$0xff] %v1256
        %1302 = vst [vmem:[%s361 + $0x10] sm:$0xff] %v1259
        %1303 = vst [vmem:[%s361 + $0x18] sm:$0xff] %v1262
        %1304 = vst [vmem:[%s361 + $0x20] sm:$0xff] %v1265
        %1305 = vst [vmem:[%s361 + $0x28] sm:$0xff] %v1268
        %1306 = vst [vmem:[%s361 + $0x30] sm:$0xff] %v1271
        %1307 = vst [vmem:[%s361 + $0x38] sm:$0xff] %v1274
        %1308 = vst [vmem:[%s361 + $0x40] sm:$0xff] %v1277
        %1309 = vst [vmem:[%s361 + $0x48] sm:$0xff] %v1280
        %1310 = vst [vmem:[%s361 + $0x50] sm:$0xff] %v1283
        %1311 = vst [vmem:[%s361 + $0x58] sm:$0xff] %v1286
        %1312 = vst [vmem:[%s361 + $0x60] sm:$0xff] %v1289
        %1313 = vst [vmem:[%s361 + $0x68] sm:$0xff] %v1292
        %1314 = vst [vmem:[%s361 + $0x70] sm:$0xff] %v1295
        %1315 = vst [vmem:[%s361 + $0x78] sm:$0xff] %v1298
        %v1316 = vld [vmem:[#allocation2 + $0x8] sm:$0xff]
        %v1317 = vld [vmem:[#allocation2 + $0x28] sm:$0xff]
        %v1318 = vld [vmem:[#allocation2 + $0x48] sm:$0xff]
        %v1319 = vld [vmem:[#allocation2 + $0x68] sm:$0xff]
        %v1320 = vld [vmem:[#allocation2 + $0x88] sm:$0xff]
        %v1321 = vld [vmem:[#allocation2 + $0xa8] sm:$0xff]
        %v1322 = vld [vmem:[#allocation2 + $0xc8] sm:$0xff]
        %v1323 = vld [vmem:[#allocation2 + $0xe8] sm:$0xff]
        %v1324 = vld [vmem:[#allocation2 + $0x108] sm:$0xff]
        %v1325 = vld [vmem:[#allocation2 + $0x128] sm:$0xff]
        %v1326 = vld [vmem:[#allocation2 + $0x148] sm:$0xff]
        %v1327 = vld [vmem:[#allocation2 + $0x168] sm:$0xff]
        %v1328 = vld [vmem:[#allocation2 + $0x188] sm:$0xff]
        %v1329 = vld [vmem:[#allocation2 + $0x1a8] sm:$0xff]
        %v1330 = vld [vmem:[#allocation2 + $0x1c8] sm:$0xff]
        %v1331 = vld [vmem:[#allocation2 + $0x1e8] sm:$0xff]
        %1332 = vmatpush.msra.mxu0 %v1218
        %1333 = vmatpush.msra.mxu0 %v1217
        %1334 = vmatpush.msra.mxu0 %v1216
        %1335 = vmatpush.msra.mxu0 %v1215
        %1336 = vmatpush.msra.mxu0 %v1214
        %1337 = vmatpush.msra.mxu0 %v1213
        %1338 = vmatpush.msra.mxu0 %v1212
        %1339 = vmatpush.msra.mxu0 %v1211
        %1340 = vmatpush.msra.mxu0 %v1210
        %1341 = vmatpush.msra.mxu0 %v1209
        %1342 = vmatpush.msra.mxu0 %v1208
        %1343 = vmatpush.msra.mxu0 %v1207
        %1344 = vmatpush.msra.mxu0 %v1206
        %1345 = vmatpush.msra.mxu0 %v1205
        %1346 = vmatpush.msra.mxu0 %v1204
        %1347 = vmatpush.msra.mxu0 %v1203
        %1348 = vmatmul.f32.gmra.mxu0 %v1316
        %v1349 = vpop.f32.mrf.mxu0
        %v1350 = vadd.f32 0.0, %v1349
        %1351 = vmatmul.f32.gmra.mxu0 %v1317
        %v1352 = vpop.f32.mrf.mxu0
        %v1353 = vadd.f32 0.0, %v1352
        %1354 = vmatmul.f32.gmra.mxu0 %v1318
        %v1355 = vpop.f32.mrf.mxu0
        %v1356 = vadd.f32 0.0, %v1355
        %1357 = vmatmul.f32.gmra.mxu0 %v1319
        %v1358 = vpop.f32.mrf.mxu0
        %v1359 = vadd.f32 0.0, %v1358
        %1360 = vmatmul.f32.gmra.mxu0 %v1320
        %v1361 = vpop.f32.mrf.mxu0
        %v1362 = vadd.f32 0.0, %v1361
        %1363 = vmatmul.f32.gmra.mxu0 %v1321
        %v1364 = vpop.f32.mrf.mxu0
        %v1365 = vadd.f32 0.0, %v1364
        %1366 = vmatmul.f32.gmra.mxu0 %v1322
        %v1367 = vpop.f32.mrf.mxu0
        %v1368 = vadd.f32 0.0, %v1367
        %1369 = vmatmul.f32.gmra.mxu0 %v1323
        %v1370 = vpop.f32.mrf.mxu0
        %v1371 = vadd.f32 0.0, %v1370
        %1372 = vmatmul.f32.gmra.mxu0 %v1324
        %v1373 = vpop.f32.mrf.mxu0
        %v1374 = vadd.f32 0.0, %v1373
        %1375 = vmatmul.f32.gmra.mxu0 %v1325
        %v1376 = vpop.f32.mrf.mxu0
        %v1377 = vadd.f32 0.0, %v1376
        %1378 = vmatmul.f32.gmra.mxu0 %v1326
        %v1379 = vpop.f32.mrf.mxu0
        %v1380 = vadd.f32 0.0, %v1379
        %1381 = vmatmul.f32.gmra.mxu0 %v1327
        %v1382 = vpop.f32.mrf.mxu0
        %v1383 = vadd.f32 0.0, %v1382
        %1384 = vmatmul.f32.gmra.mxu0 %v1328
        %v1385 = vpop.f32.mrf.mxu0
        %v1386 = vadd.f32 0.0, %v1385
        %1387 = vmatmul.f32.gmra.mxu0 %v1329
        %v1388 = vpop.f32.mrf.mxu0
        %v1389 = vadd.f32 0.0, %v1388
        %1390 = vmatmul.f32.gmra.mxu0 %v1330
        %v1391 = vpop.f32.mrf.mxu0
        %v1392 = vadd.f32 0.0, %v1391
        %1393 = vmatmul.f32.gmra.mxu0 %v1331
        %v1394 = vpop.f32.mrf.mxu0
        %v1395 = vadd.f32 0.0, %v1394
        %1396 = vdwg.mxu0
        %s1397 = scalar_lea.vmem %s361, 128 [#allocation9]
        %1398 = vst [vmem:[%s1397] sm:$0xff] %v1350
        %1399 = vst [vmem:[%s1397 + $0x8] sm:$0xff] %v1353
        %1400 = vst [vmem:[%s1397 + $0x10] sm:$0xff] %v1356
        %1401 = vst [vmem:[%s1397 + $0x18] sm:$0xff] %v1359
        %1402 = vst [vmem:[%s1397 + $0x20] sm:$0xff] %v1362
        %1403 = vst [vmem:[%s1397 + $0x28] sm:$0xff] %v1365
        %1404 = vst [vmem:[%s1397 + $0x30] sm:$0xff] %v1368
        %1405 = vst [vmem:[%s1397 + $0x38] sm:$0xff] %v1371
        %1406 = vst [vmem:[%s1397 + $0x40] sm:$0xff] %v1374
        %1407 = vst [vmem:[%s1397 + $0x48] sm:$0xff] %v1377
        %1408 = vst [vmem:[%s1397 + $0x50] sm:$0xff] %v1380
        %1409 = vst [vmem:[%s1397 + $0x58] sm:$0xff] %v1383
        %1410 = vst [vmem:[%s1397 + $0x60] sm:$0xff] %v1386
        %1411 = vst [vmem:[%s1397 + $0x68] sm:$0xff] %v1389
        %1412 = vst [vmem:[%s1397 + $0x70] sm:$0xff] %v1392
        %1413 = vst [vmem:[%s1397 + $0x78] sm:$0xff] %v1395
        %v1414 = vld [vmem:[#allocation2 + $0x10] sm:$0xff]
        %v1415 = vld [vmem:[#allocation2 + $0x30] sm:$0xff]
        %v1416 = vld [vmem:[#allocation2 + $0x50] sm:$0xff]
        %v1417 = vld [vmem:[#allocation2 + $0x70] sm:$0xff]
        %v1418 = vld [vmem:[#allocation2 + $0x90] sm:$0xff]
        %v1419 = vld [vmem:[#allocation2 + $0xb0] sm:$0xff]
        %v1420 = vld [vmem:[#allocation2 + $0xd0] sm:$0xff]
        %v1421 = vld [vmem:[#allocation2 + $0xf0] sm:$0xff]
        %v1422 = vld [vmem:[#allocation2 + $0x110] sm:$0xff]
        %v1423 = vld [vmem:[#allocation2 + $0x130] sm:$0xff]
        %v1424 = vld [vmem:[#allocation2 + $0x150] sm:$0xff]
        %v1425 = vld [vmem:[#allocation2 + $0x170] sm:$0xff]
        %v1426 = vld [vmem:[#allocation2 + $0x190] sm:$0xff]
        %v1427 = vld [vmem:[#allocation2 + $0x1b0] sm:$0xff]
        %v1428 = vld [vmem:[#allocation2 + $0x1d0] sm:$0xff]
        %v1429 = vld [vmem:[#allocation2 + $0x1f0] sm:$0xff]
        %1430 = vmatpush.msra.mxu0 %v1218
        %1431 = vmatpush.msra.mxu0 %v1217
        %1432 = vmatpush.msra.mxu0 %v1216
        %1433 = vmatpush.msra.mxu0 %v1215
        %1434 = vmatpush.msra.mxu0 %v1214
        %1435 = vmatpush.msra.mxu0 %v1213
        %1436 = vmatpush.msra.mxu0 %v1212
        %1437 = vmatpush.msra.mxu0 %v1211
        %1438 = vmatpush.msra.mxu0 %v1210
        %1439 = vmatpush.msra.mxu0 %v1209
        %1440 = vmatpush.msra.mxu0 %v1208
        %1441 = vmatpush.msra.mxu0 %v1207
        %1442 = vmatpush.msra.mxu0 %v1206
        %1443 = vmatpush.msra.mxu0 %v1205
        %1444 = vmatpush.msra.mxu0 %v1204
        %1445 = vmatpush.msra.mxu0 %v1203
        %1446 = vmatmul.f32.gmra.mxu0 %v1414
        %v1447 = vpop.f32.mrf.mxu0
        %v1448 = vadd.f32 0.0, %v1447
        %1449 = vmatmul.f32.gmra.mxu0 %v1415
        %v1450 = vpop.f32.mrf.mxu0
        %v1451 = vadd.f32 0.0, %v1450
        %1452 = vmatmul.f32.gmra.mxu0 %v1416
        %v1453 = vpop.f32.mrf.mxu0
        %v1454 = vadd.f32 0.0, %v1453
        %1455 = vmatmul.f32.gmra.mxu0 %v1417
        %v1456 = vpop.f32.mrf.mxu0
        %v1457 = vadd.f32 0.0, %v1456
        %1458 = vmatmul.f32.gmra.mxu0 %v1418
        %v1459 = vpop.f32.mrf.mxu0
        %v1460 = vadd.f32 0.0, %v1459
        %1461 = vmatmul.f32.gmra.mxu0 %v1419
        %v1462 = vpop.f32.mrf.mxu0
        %v1463 = vadd.f32 0.0, %v1462
        %1464 = vmatmul.f32.gmra.mxu0 %v1420
        %v1465 = vpop.f32.mrf.mxu0
        %v1466 = vadd.f32 0.0, %v1465
        %1467 = vmatmul.f32.gmra.mxu0 %v1421
        %v1468 = vpop.f32.mrf.mxu0
        %v1469 = vadd.f32 0.0, %v1468
        %1470 = vmatmul.f32.gmra.mxu0 %v1422
        %v1471 = vpop.f32.mrf.mxu0
        %v1472 = vadd.f32 0.0, %v1471
        %1473 = vmatmul.f32.gmra.mxu0 %v1423
        %v1474 = vpop.f32.mrf.mxu0
        %v1475 = vadd.f32 0.0, %v1474
        %1476 = vmatmul.f32.gmra.mxu0 %v1424
        %v1477 = vpop.f32.mrf.mxu0
        %v1478 = vadd.f32 0.0, %v1477
        %1479 = vmatmul.f32.gmra.mxu0 %v1425
        %v1480 = vpop.f32.mrf.mxu0
        %v1481 = vadd.f32 0.0, %v1480
        %1482 = vmatmul.f32.gmra.mxu0 %v1426
        %v1483 = vpop.f32.mrf.mxu0
        %v1484 = vadd.f32 0.0, %v1483
        %1485 = vmatmul.f32.gmra.mxu0 %v1427
        %v1486 = vpop.f32.mrf.mxu0
        %v1487 = vadd.f32 0.0, %v1486
        %1488 = vmatmul.f32.gmra.mxu0 %v1428
        %v1489 = vpop.f32.mrf.mxu0
        %v1490 = vadd.f32 0.0, %v1489
        %1491 = vmatmul.f32.gmra.mxu0 %v1429
        %v1492 = vpop.f32.mrf.mxu0
        %v1493 = vadd.f32 0.0, %v1492
        %1494 = vdwg.mxu0
        %s1495 = scalar_lea.vmem %s361, 256 [#allocation9]
        %1496 = vst [vmem:[%s1495] sm:$0xff] %v1448
        %1497 = vst [vmem:[%s1495 + $0x8] sm:$0xff] %v1451
        %1498 = vst [vmem:[%s1495 + $0x10] sm:$0xff] %v1454
        %1499 = vst [vmem:[%s1495 + $0x18] sm:$0xff] %v1457
        %1500 = vst [vmem:[%s1495 + $0x20] sm:$0xff] %v1460
        %1501 = vst [vmem:[%s1495 + $0x28] sm:$0xff] %v1463
        %1502 = vst [vmem:[%s1495 + $0x30] sm:$0xff] %v1466
        %1503 = vst [vmem:[%s1495 + $0x38] sm:$0xff] %v1469
        %1504 = vst [vmem:[%s1495 + $0x40] sm:$0xff] %v1472
        %1505 = vst [vmem:[%s1495 + $0x48] sm:$0xff] %v1475
        %1506 = vst [vmem:[%s1495 + $0x50] sm:$0xff] %v1478
        %1507 = vst [vmem:[%s1495 + $0x58] sm:$0xff] %v1481
        %1508 = vst [vmem:[%s1495 + $0x60] sm:$0xff] %v1484
        %1509 = vst [vmem:[%s1495 + $0x68] sm:$0xff] %v1487
        %1510 = vst [vmem:[%s1495 + $0x70] sm:$0xff] %v1490
        %1511 = vst [vmem:[%s1495 + $0x78] sm:$0xff] %v1493
        %v1512 = vld [vmem:[#allocation2 + $0x18] sm:$0xff]
        %v1513 = vld [vmem:[#allocation2 + $0x38] sm:$0xff]
        %v1514 = vld [vmem:[#allocation2 + $0x58] sm:$0xff]
        %v1515 = vld [vmem:[#allocation2 + $0x78] sm:$0xff]
        %v1516 = vld [vmem:[#allocation2 + $0x98] sm:$0xff]
        %v1517 = vld [vmem:[#allocation2 + $0xb8] sm:$0xff]
        %v1518 = vld [vmem:[#allocation2 + $0xd8] sm:$0xff]
        %v1519 = vld [vmem:[#allocation2 + $0xf8] sm:$0xff]
        %v1520 = vld [vmem:[#allocation2 + $0x118] sm:$0xff]
        %v1521 = vld [vmem:[#allocation2 + $0x138] sm:$0xff]
        %v1522 = vld [vmem:[#allocation2 + $0x158] sm:$0xff]
        %v1523 = vld [vmem:[#allocation2 + $0x178] sm:$0xff]
        %v1524 = vld [vmem:[#allocation2 + $0x198] sm:$0xff]
        %v1525 = vld [vmem:[#allocation2 + $0x1b8] sm:$0xff]
        %v1526 = vld [vmem:[#allocation2 + $0x1d8] sm:$0xff]
        %v1527 = vld [vmem:[#allocation2 + $0x1f8] sm:$0xff]
        %1528 = vmatpush.msra.mxu0 %v1218
        %1529 = vmatpush.msra.mxu0 %v1217
        %1530 = vmatpush.msra.mxu0 %v1216
        %1531 = vmatpush.msra.mxu0 %v1215
        %1532 = vmatpush.msra.mxu0 %v1214
        %1533 = vmatpush.msra.mxu0 %v1213
        %1534 = vmatpush.msra.mxu0 %v1212
        %1535 = vmatpush.msra.mxu0 %v1211
        %1536 = vmatpush.msra.mxu0 %v1210
        %1537 = vmatpush.msra.mxu0 %v1209
        %1538 = vmatpush.msra.mxu0 %v1208
        %1539 = vmatpush.msra.mxu0 %v1207
        %1540 = vmatpush.msra.mxu0 %v1206
        %1541 = vmatpush.msra.mxu0 %v1205
        %1542 = vmatpush.msra.mxu0 %v1204
        %1543 = vmatpush.msra.mxu0 %v1203
        %1544 = vmatmul.f32.gmra.mxu0 %v1512
        %v1545 = vpop.f32.mrf.mxu0
        %v1546 = vadd.f32 0.0, %v1545
        %1547 = vmatmul.f32.gmra.mxu0 %v1513
        %v1548 = vpop.f32.mrf.mxu0
        %v1549 = vadd.f32 0.0, %v1548
        %1550 = vmatmul.f32.gmra.mxu0 %v1514
        %v1551 = vpop.f32.mrf.mxu0
        %v1552 = vadd.f32 0.0, %v1551
        %1553 = vmatmul.f32.gmra.mxu0 %v1515
        %v1554 = vpop.f32.mrf.mxu0
        %v1555 = vadd.f32 0.0, %v1554
        %1556 = vmatmul.f32.gmra.mxu0 %v1516
        %v1557 = vpop.f32.mrf.mxu0
        %v1558 = vadd.f32 0.0, %v1557
        %1559 = vmatmul.f32.gmra.mxu0 %v1517
        %v1560 = vpop.f32.mrf.mxu0
        %v1561 = vadd.f32 0.0, %v1560
        %1562 = vmatmul.f32.gmra.mxu0 %v1518
        %v1563 = vpop.f32.mrf.mxu0
        %v1564 = vadd.f32 0.0, %v1563
        %1565 = vmatmul.f32.gmra.mxu0 %v1519
        %v1566 = vpop.f32.mrf.mxu0
        %v1567 = vadd.f32 0.0, %v1566
        %1568 = vmatmul.f32.gmra.mxu0 %v1520
        %v1569 = vpop.f32.mrf.mxu0
        %v1570 = vadd.f32 0.0, %v1569
        %1571 = vmatmul.f32.gmra.mxu0 %v1521
        %v1572 = vpop.f32.mrf.mxu0
        %v1573 = vadd.f32 0.0, %v1572
        %1574 = vmatmul.f32.gmra.mxu0 %v1522
        %v1575 = vpop.f32.mrf.mxu0
        %v1576 = vadd.f32 0.0, %v1575
        %1577 = vmatmul.f32.gmra.mxu0 %v1523
        %v1578 = vpop.f32.mrf.mxu0
        %v1579 = vadd.f32 0.0, %v1578
        %1580 = vmatmul.f32.gmra.mxu0 %v1524
        %v1581 = vpop.f32.mrf.mxu0
        %v1582 = vadd.f32 0.0, %v1581
        %1583 = vmatmul.f32.gmra.mxu0 %v1525
        %v1584 = vpop.f32.mrf.mxu0
        %v1585 = vadd.f32 0.0, %v1584
        %1586 = vmatmul.f32.gmra.mxu0 %v1526
        %v1587 = vpop.f32.mrf.mxu0
        %v1588 = vadd.f32 0.0, %v1587
        %1589 = vmatmul.f32.gmra.mxu0 %v1527
        %v1590 = vpop.f32.mrf.mxu0
        %v1591 = vadd.f32 0.0, %v1590
        %1592 = vdwg.mxu0
        %s1593 = scalar_lea.vmem %s361, 384 [#allocation9]
        %1594 = vst [vmem:[%s1593] sm:$0xff] %v1546
        %1595 = vst [vmem:[%s1593 + $0x8] sm:$0xff] %v1549
        %1596 = vst [vmem:[%s1593 + $0x10] sm:$0xff] %v1552
        %1597 = vst [vmem:[%s1593 + $0x18] sm:$0xff] %v1555
        %1598 = vst [vmem:[%s1593 + $0x20] sm:$0xff] %v1558
        %1599 = vst [vmem:[%s1593 + $0x28] sm:$0xff] %v1561
        %1600 = vst [vmem:[%s1593 + $0x30] sm:$0xff] %v1564
        %1601 = vst [vmem:[%s1593 + $0x38] sm:$0xff] %v1567
        %1602 = vst [vmem:[%s1593 + $0x40] sm:$0xff] %v1570
        %1603 = vst [vmem:[%s1593 + $0x48] sm:$0xff] %v1573
        %1604 = vst [vmem:[%s1593 + $0x50] sm:$0xff] %v1576
        %1605 = vst [vmem:[%s1593 + $0x58] sm:$0xff] %v1579
        %1606 = vst [vmem:[%s1593 + $0x60] sm:$0xff] %v1582
        %1607 = vst [vmem:[%s1593 + $0x68] sm:$0xff] %v1585
        %1608 = vst [vmem:[%s1593 + $0x70] sm:$0xff] %v1588
        %1609 = vst [vmem:[%s1593 + $0x78] sm:$0xff] %v1591
        %s1610 = sand.u32 %s215, 1
        %s1611 = scalar_lea.sflag [#allocation6], %s1610
        %s1612 = sand.u32 %s215, 1
        %s1613 = smul.addr %s1612, 512
        %s1614 = scalar_lea.vmem [#allocation9], %s1613
        // Predicated region
        $region65: #{tpu_custom_call.1} parent=47 // pred_check
          %p1615 = pneg %p225
        $region66: #{tpu_custom_call.1} parent=47 // pred_check_branch
          %1617 = sbr.rel (%p1615) target = $region68
        $region67: #{tpu_custom_call.1} parent=47 // pred_region
          %s1618 = smul.u32 16, %s29
          %1620 = vsyncadd %s1611, 0
          %s1621 = sadd.s32 %s30, %s1618
          %s1622 = smul.addr %s28, 64
          %s1623 = sadd.s32 %s1621, %s1622
          %s1624 = smul.addr %s1623, 8
          %s1625 = scalar_lea.hbm %s7, %s1624
          %s1626 = sshll.u32 %s1614, 4
          %s1627 = int_to_ptr.vmem [resolvable:$true] %s1626
          %s1628 = sshll.u32 %s1625, 4
          %s1629 = int_to_ptr.hbm [resolvable:$true] %s1628
          %1634 = dma.vmem_to_hbm [thread:$0]  %s1627, 8192, %s1629, %s1611, 128, 128, 8
        $region68: #{tpu_custom_call.1} parent=47 // pred_fallthru
          _
      $region48: #{tpu_custom_call.1} parent=5 // pred_fallthru
        _
      %p1635 = scmp.le.s32.totalorder 2, %s18
      // Predicated region
      $region69: #{tpu_custom_call.1} parent=5 // pred_check
        %p1636 = pneg %p1635
      $region70: #{tpu_custom_call.1} parent=5 // pred_check_branch
        %1638 = sbr.rel (%p1636) target = $region72
      $region71: #{tpu_custom_call.1} parent=5 // pred_region
        %s1639 = ssub.s32 %s18, 2
        // Predicated region
        $region73: #{tpu_custom_call.1} parent=71 // pred_check
          %p1640 = pneg %p231
        $region74: #{tpu_custom_call.1} parent=71 // pred_check_branch
          %1642 = sbr.rel (%p1640) target = $region76
        $region75: #{tpu_custom_call.1} parent=71 // pred_region
          %s1643 = sand.u32 %s216, 1
          %s1644 = scalar_lea.sflag [#allocation6], %s1643
          %s1645 = sand.u32 %s216, 1
          %s1646 = smul.addr %s1645, 512
          %s1647 = scalar_lea.vmem [#allocation9], %s1646
          %1649 = dma.done %s1644, 8192
        $region76: #{tpu_custom_call.1} parent=71 // pred_fallthru
          _
      $region72: #{tpu_custom_call.1} parent=5 // pred_fallthru
        _
    $region6: #{tpu_custom_call.1} parent=1 // loop_footer
      %s22 = sadd.s32 1, %s18
    $region7: #{tpu_custom_call.1} parent=1 // loop_footer_branch
      %17 = sbr.rel target = $region3
    $region8: #{tpu_custom_call.1} parent=1 // loop_exit
      _
    %1650 = vsyncpa [#allocation5], 1
    %s1651 = scalar_lea.sflag [#allocation5], 1
    %1652 = vsyncpa %s1651, 1
    %1653 = vsyncpa [#allocation8], 1
    %1654 = vsyncpa [#allocation6], 1
    %s1655 = scalar_lea.sflag [#allocation6], 1
    %1656 = vsyncpa %s1655, 1

</llo_original>
